<compile_context>
chip_gen: v7x
topology: tpu7x:2x2x1
jax: 0.10.0
libtpu: 0.0.40
codegen_flags: <defaults>
</compile_context>

<pallas_src>
import functools

import jax
import jax.numpy as jnp
import numpy as np
from jax.experimental import pallas as pl
from jax.experimental.pallas import tpu as pltpu


# ---------------------------------------------------------------------------
# Pallas kernel: fully fused MLP (Linear+LeakyReLU x4, Linear+Tanh)
# ---------------------------------------------------------------------------
def _generator_mlp_kernel(x_ref, *refs, n_layers):
    """refs = (w0, b0, w1, b1, ..., w{L-1}, b{L-1}, o_ref)."""
    o_ref = refs[-1]
    x = x_ref[...].astype(jnp.float32)                       # (M, latent_dim)
    for i in range(n_layers):
        w = refs[2 * i][...]                                 # (K_i, N_i)
        b = refs[2 * i + 1][...]                             # (1, N_i)
        y = jnp.dot(x, w, preferred_element_type=jnp.float32) + b   # MXU
        if i < n_layers - 1:
            x = jnp.where(y > 0, y, 0.2 * y)                 # LeakyReLU(0.2)
        else:
            x = jnp.tanh(y)                                  # final Tanh (EUP)
    o_ref[...] = x.astype(o_ref.dtype)


def _round_up(n, m):
    return ((n + m - 1) // m) * m


def generator_forward(latent, params, image_shape):
    """Fused forward pass: latent (M, latent_dim) -> (M, *image_shape)."""
    M = latent.shape[0]
    n_layers = len(params)
    out_dim = int(np.prod(image_shape))
    out_pad = _round_up(out_dim, 128)                        # lane-dense output

    # Zero-pad the last layer's output features to a multiple of 128 so the
    # final store is a full-width (unmasked) vector store. Padding columns
    # produce tanh(0)=0 and are sliced off below.
    flat = []
    for i, (w, b) in enumerate(params):
        if i == n_layers - 1 and w.shape[1] != out_pad:
            w = jnp.pad(w, ((0, 0), (0, out_pad - out_dim)))
            b = jnp.pad(b, ((0, 0), (0, out_pad - out_dim)))
        flat += [w, b]

    n_inputs = 1 + 2 * n_layers
    out = pl.pallas_call(
        functools.partial(_generator_mlp_kernel, n_layers=n_layers),
        out_shape=jax.ShapeDtypeStruct((M, out_pad), jnp.float32),
        in_specs=[pl.BlockSpec(memory_space=pltpu.MemorySpace.VMEM)] * n_inputs,
        out_specs=pl.BlockSpec(memory_space=pltpu.MemorySpace.VMEM),
        compiler_params=pltpu.CompilerParams(
            vmem_limit_bytes=32 * 1024 * 1024),
    )(latent, *flat)

    return out[:, :out_dim].reshape(M, *image_shape)


# ---------------------------------------------------------------------------
# Parameter init: latent -> 128 -> 256 -> 512 -> 1024 -> prod(image_shape)
# ---------------------------------------------------------------------------
def init_generator_params(key, latent_dim, image_shape):
    out_dim = int(np.prod(image_shape))
    dims = [latent_dim, 128, 256, 512, 1024, out_dim]
    params = []
    for i in range(len(dims) - 1):
        fan_in, fan_out = dims[i], dims[i + 1]
        key, kw, kb = jax.random.split(key, 3)
        bound = 1.0 / np.sqrt(fan_in)            # PyTorch nn.Linear default init
        w = jax.random.uniform(kw, (fan_in, fan_out), jnp.float32, -bound, bound)
        b = jax.random.uniform(kb, (1, fan_out), jnp.float32, -bound, bound)
        params.append((w, b))
    return params


def generator_reference(latent, params, image_shape):
    x = latent
    n_layers = len(params)
    for i, (w, b) in enumerate(params):
        x = x @ w + b
        if i < n_layers - 1:
            x = jnp.where(x > 0, x, 0.2 * x)
        else:
            x = jnp.tanh(x)
    return x.reshape(x.shape[0], *image_shape)


if __name__ == "__main__":
    batch = 2
    latent_dim = 32
    image_shape = (1, 8, 8)                      # small C,H,W for this synthetic run

    key = jax.random.PRNGKey(0)
    key, k_lat = jax.random.split(key)
    latent = jax.random.normal(k_lat, (batch, latent_dim), jnp.float32)

    params = init_generator_params(key, latent_dim, image_shape)

    out = generator_forward(latent, params, image_shape)
    out = jax.block_until_ready(out)

    ref = generator_reference(latent, params, image_shape)
    assert out.shape == (batch, *image_shape), out.shape
    np.testing.assert_allclose(np.asarray(out), np.asarray(ref),
                               rtol=1e-5, atol=1e-5)

    print("KERNEL_OK")
</pallas_src>

<mosaic_0001>
module attributes {stable_mosaic.version = 11 : i64} {
  func.func @_generator_mlp_kernel(%arg0: memref<2x32xf32, #tpu.memory_space<vmem>>, %arg1: memref<32x128xf32, #tpu.memory_space<vmem>>, %arg2: memref<1x128xf32, #tpu.memory_space<vmem>>, %arg3: memref<128x256xf32, #tpu.memory_space<vmem>>, %arg4: memref<1x256xf32, #tpu.memory_space<vmem>>, %arg5: memref<256x512xf32, #tpu.memory_space<vmem>>, %arg6: memref<1x512xf32, #tpu.memory_space<vmem>>, %arg7: memref<512x1024xf32, #tpu.memory_space<vmem>>, %arg8: memref<1x1024xf32, #tpu.memory_space<vmem>>, %arg9: memref<1024x128xf32, #tpu.memory_space<vmem>>, %arg10: memref<1x128xf32, #tpu.memory_space<vmem>>, %arg11: memref<2x128xf32, #tpu.memory_space<vmem>>) attributes {dimension_semantics = [], scalar_prefetch = 0 : i64, scratch_operands = 0 : i64, tpu.core_type = #tpu.core_type<tc>} {
    %c0 = arith.constant 0 : index
    %c0_0 = arith.constant 0 : index
    %0 = vector.load %arg0[%c0, %c0_0] : memref<2x32xf32, #tpu.memory_space<vmem>>, vector<2x32xf32>
    %c0_1 = arith.constant 0 : index
    %c0_2 = arith.constant 0 : index
    %1 = vector.load %arg1[%c0_1, %c0_2] : memref<32x128xf32, #tpu.memory_space<vmem>>, vector<32x128xf32>
    %c0_3 = arith.constant 0 : index
    %c0_4 = arith.constant 0 : index
    %2 = vector.load %arg2[%c0_3, %c0_4] : memref<1x128xf32, #tpu.memory_space<vmem>>, vector<1x128xf32>
    %cst = arith.constant dense<0.000000e+00> : vector<2x128xf32>
    %3 = tpu.matmul %0, %1, %cst {dimension_numbers = #tpu.dot_dimension_numbers<[1], [0], [0], [1], [0, 0, 1, 1], [], []>} : vector<2x32xf32>, vector<32x128xf32>, vector<2x128xf32> -> vector<2x128xf32>
    %4 = vector.broadcast %2 : vector<1x128xf32> to vector<2x128xf32>
    %5 = arith.addf %3, %4 : vector<2x128xf32>
    %cst_5 = arith.constant 0.000000e+00 : f32
    %6 = vector.broadcast %cst_5 : f32 to vector<2x128xf32>
    %7 = arith.cmpf ogt, %5, %6 : vector<2x128xf32>
    %cst_6 = arith.constant 2.000000e-01 : f32
    %8 = vector.broadcast %cst_6 : f32 to vector<2x128xf32>
    %9 = arith.mulf %8, %5 : vector<2x128xf32>
    %10 = arith.select %7, %5, %9 : vector<2x128xi1>, vector<2x128xf32>
    %c0_7 = arith.constant 0 : index
    %c0_8 = arith.constant 0 : index
    %11 = vector.load %arg3[%c0_7, %c0_8] : memref<128x256xf32, #tpu.memory_space<vmem>>, vector<128x256xf32>
    %c0_9 = arith.constant 0 : index
    %c0_10 = arith.constant 0 : index
    %12 = vector.load %arg4[%c0_9, %c0_10] : memref<1x256xf32, #tpu.memory_space<vmem>>, vector<1x256xf32>
    %cst_11 = arith.constant dense<0.000000e+00> : vector<2x256xf32>
    %13 = tpu.matmul %10, %11, %cst_11 {dimension_numbers = #tpu.dot_dimension_numbers<[1], [0], [0], [1], [0, 0, 1, 1], [], []>} : vector<2x128xf32>, vector<128x256xf32>, vector<2x256xf32> -> vector<2x256xf32>
    %14 = vector.broadcast %12 : vector<1x256xf32> to vector<2x256xf32>
    %15 = arith.addf %13, %14 : vector<2x256xf32>
    %cst_12 = arith.constant 0.000000e+00 : f32
    %16 = vector.broadcast %cst_12 : f32 to vector<2x256xf32>
    %17 = arith.cmpf ogt, %15, %16 : vector<2x256xf32>
    %cst_13 = arith.constant 2.000000e-01 : f32
    %18 = vector.broadcast %cst_13 : f32 to vector<2x256xf32>
    %19 = arith.mulf %18, %15 : vector<2x256xf32>
    %20 = arith.select %17, %15, %19 : vector<2x256xi1>, vector<2x256xf32>
    %c0_14 = arith.constant 0 : index
    %c0_15 = arith.constant 0 : index
    %21 = vector.load %arg5[%c0_14, %c0_15] : memref<256x512xf32, #tpu.memory_space<vmem>>, vector<256x512xf32>
    %c0_16 = arith.constant 0 : index
    %c0_17 = arith.constant 0 : index
    %22 = vector.load %arg6[%c0_16, %c0_17] : memref<1x512xf32, #tpu.memory_space<vmem>>, vector<1x512xf32>
    %cst_18 = arith.constant dense<0.000000e+00> : vector<2x512xf32>
    %23 = tpu.matmul %20, %21, %cst_18 {dimension_numbers = #tpu.dot_dimension_numbers<[1], [0], [0], [1], [0, 0, 1, 1], [], []>} : vector<2x256xf32>, vector<256x512xf32>, vector<2x512xf32> -> vector<2x512xf32>
    %24 = vector.broadcast %22 : vector<1x512xf32> to vector<2x512xf32>
    %25 = arith.addf %23, %24 : vector<2x512xf32>
    %cst_19 = arith.constant 0.000000e+00 : f32
    %26 = vector.broadcast %cst_19 : f32 to vector<2x512xf32>
    %27 = arith.cmpf ogt, %25, %26 : vector<2x512xf32>
    %cst_20 = arith.constant 2.000000e-01 : f32
    %28 = vector.broadcast %cst_20 : f32 to vector<2x512xf32>
    %29 = arith.mulf %28, %25 : vector<2x512xf32>
    %30 = arith.select %27, %25, %29 : vector<2x512xi1>, vector<2x512xf32>
    %c0_21 = arith.constant 0 : index
    %c0_22 = arith.constant 0 : index
    %31 = vector.load %arg7[%c0_21, %c0_22] : memref<512x1024xf32, #tpu.memory_space<vmem>>, vector<512x1024xf32>
    %c0_23 = arith.constant 0 : index
    %c0_24 = arith.constant 0 : index
    %32 = vector.load %arg8[%c0_23, %c0_24] : memref<1x1024xf32, #tpu.memory_space<vmem>>, vector<1x1024xf32>
    %cst_25 = arith.constant dense<0.000000e+00> : vector<2x1024xf32>
    %33 = tpu.matmul %30, %31, %cst_25 {dimension_numbers = #tpu.dot_dimension_numbers<[1], [0], [0], [1], [0, 0, 1, 1], [], []>} : vector<2x512xf32>, vector<512x1024xf32>, vector<2x1024xf32> -> vector<2x1024xf32>
    %34 = vector.broadcast %32 : vector<1x1024xf32> to vector<2x1024xf32>
    %35 = arith.addf %33, %34 : vector<2x1024xf32>
    %cst_26 = arith.constant 0.000000e+00 : f32
    %36 = vector.broadcast %cst_26 : f32 to vector<2x1024xf32>
    %37 = arith.cmpf ogt, %35, %36 : vector<2x1024xf32>
    %cst_27 = arith.constant 2.000000e-01 : f32
    %38 = vector.broadcast %cst_27 : f32 to vector<2x1024xf32>
    %39 = arith.mulf %38, %35 : vector<2x1024xf32>
    %40 = arith.select %37, %35, %39 : vector<2x1024xi1>, vector<2x1024xf32>
    %c0_28 = arith.constant 0 : index
    %c0_29 = arith.constant 0 : index
    %41 = vector.load %arg9[%c0_28, %c0_29] : memref<1024x128xf32, #tpu.memory_space<vmem>>, vector<1024x128xf32>
    %c0_30 = arith.constant 0 : index
    %c0_31 = arith.constant 0 : index
    %42 = vector.load %arg10[%c0_30, %c0_31] : memref<1x128xf32, #tpu.memory_space<vmem>>, vector<1x128xf32>
    %cst_32 = arith.constant dense<0.000000e+00> : vector<2x128xf32>
    %43 = tpu.matmul %40, %41, %cst_32 {dimension_numbers = #tpu.dot_dimension_numbers<[1], [0], [0], [1], [0, 0, 1, 1], [], []>} : vector<2x1024xf32>, vector<1024x128xf32>, vector<2x128xf32> -> vector<2x128xf32>
    %44 = vector.broadcast %42 : vector<1x128xf32> to vector<2x128xf32>
    %45 = arith.addf %43, %44 : vector<2x128xf32>
    %46 = math.tanh %45 : vector<2x128xf32>
    %c0_33 = arith.constant 0 : index
    %c0_34 = arith.constant 0 : index
    %47 = vector.load %arg11[%c0_33, %c0_34] : memref<2x128xf32, #tpu.memory_space<vmem>>, vector<2x128xf32>
    tpu.vector_store %arg11[%c0_33, %c0_34], %46 {strides = array<i32>} : memref<2x128xf32, #tpu.memory_space<vmem>>, vector<2x128xf32>,
    return
  }
}

</mosaic_0001>

<llo_original>
// kernel: tpu_custom_call.1
$region0: #{tpu_custom_call.1}
  #allocation0 [shape = 'u32[]', space=smem, size = 0x4, offset = 0x4, fixed_abs, tag = 'smem constant byte address 0x4 - core index']
  #allocation1 [shape = 'u32[144,128]{1,0:T(1,128)}', space=vmem, size = 0x12000, scoped, tag = 'internal scratch']
  %s0 = inlined_call_operand.hbm [shape: f32[2,32], index: 0, kind: input, shape index: {}]
  %s1 = inlined_call_operand.hbm [shape: f32[32,128], index: 1, kind: input, shape index: {}]
  %s2 = inlined_call_operand.hbm [shape: f32[1,128], index: 2, kind: input, shape index: {}]
  %s3 = inlined_call_operand.hbm [shape: f32[128,256], index: 3, kind: input, shape index: {}]
  %s4 = inlined_call_operand.hbm [shape: f32[1,256], index: 4, kind: input, shape index: {}]
  %s5 = inlined_call_operand.hbm [shape: f32[256,512], index: 5, kind: input, shape index: {}]
  %s6 = inlined_call_operand.hbm [shape: f32[1,512], index: 6, kind: input, shape index: {}]
  %s7 = inlined_call_operand.hbm [shape: f32[512,1024], index: 7, kind: input, shape index: {}]
  %s8 = inlined_call_operand.hbm [shape: f32[1,1024], index: 8, kind: input, shape index: {}]
  %s9 = inlined_call_operand.hbm [shape: f32[1024,128], index: 9, kind: input, shape index: {}]
  %s10 = inlined_call_operand.hbm [shape: f32[1,128], index: 10, kind: input, shape index: {}]
  %s11 = inlined_call_operand.hbm [shape: f32[2,128], index: 11, kind: output, shape index: {}]
  %s12 = sld [smem:[#allocation0]]
  $region98: #{tpu_custom_call.1} parent=0
    _
  %s14 = ssub.s32 1, %s12
  %s15 = scalar_select 0, %s14, %s12
  $region1: #{tpu_custom_call.1} parent=0
    #allocation2 [shape = 'u8[1024]{0}', space=vmem, size = 0x400, scoped, tag = 'input window, operand 0, single buffered']
    #allocation3 [shape = 's32[1]{0}', space=sflag, size = 0x4, scoped, tag = 'scoped memory for tpu_custom_call.1']
    #allocation4 [shape = 's32[1]{0}', space=sflag, size = 0x4, scoped, tag = 'scoped memory for tpu_custom_call.1']
    #allocation5 [shape = 'u8[16384]{0}', space=vmem, size = 0x4000, scoped, tag = 'input window, operand 1, single buffered']
    #allocation6 [shape = 's32[1]{0}', space=sflag, size = 0x4, scoped, tag = 'scoped memory for tpu_custom_call.1']
    #allocation7 [shape = 'u8[512]{0}', space=vmem, size = 0x400, scoped, tag = 'input window, operand 2, single buffered']
    #allocation8 [shape = 'u8[131072]{0}', space=vmem, size = 0x20000, scoped, tag = 'input window, operand 3, single buffered']
    #allocation9 [shape = 's32[1]{0}', space=sflag, size = 0x4, scoped, tag = 'scoped memory for tpu_custom_call.1']
    #allocation10 [shape = 'u8[1024]{0}', space=vmem, size = 0x400, scoped, tag = 'input window, operand 4, single buffered']
    #allocation11 [shape = 'u8[524288]{0}', space=vmem, size = 0x80000, scoped, tag = 'input window, operand 5, single buffered']
    #allocation12 [shape = 's32[1]{0}', space=sflag, size = 0x4, scoped, tag = 'scoped memory for tpu_custom_call.1']
    #allocation13 [shape = 'u8[2048]{0}', space=vmem, size = 0x800, scoped, tag = 'input window, operand 6, single buffered']
    #allocation14 [shape = 'u8[2097152]{0}', space=vmem, size = 0x200000, scoped, tag = 'input window, operand 7, single buffered']
    #allocation15 [shape = 's32[1]{0}', space=sflag, size = 0x4, scoped, tag = 'scoped memory for tpu_custom_call.1']
    #allocation16 [shape = 'u8[4096]{0}', space=vmem, size = 0x1000, scoped, tag = 'input window, operand 8, single buffered']
    #allocation17 [shape = 'u8[524288]{0}', space=vmem, size = 0x80000, scoped, tag = 'input window, operand 9, single buffered']
    #allocation18 [shape = 's32[1]{0}', space=sflag, size = 0x4, scoped, tag = 'scoped memory for tpu_custom_call.1']
    #allocation19 [shape = 'u8[512]{0}', space=vmem, size = 0x400, scoped, tag = 'input window, operand 10, single buffered']
    #allocation20 [shape = 'u8[1024]{0}', space=vmem, size = 0x400, scoped, tag = 'output window, operand 0, single buffered']
    %16 = vsyncpa [#allocation3], 0
    %17 = vsyncpa [#allocation6], 0
    %18 = vsyncpa [#allocation9], 0
    %19 = vsyncpa [#allocation12], 0
    %20 = vsyncpa [#allocation15], 0
    %21 = vsyncpa [#allocation18], 0
    %22 = vsyncpa [#allocation4], 0
    // Predicated region
    $region2: #{tpu_custom_call.1} parent=1 // pred_check
      _
    $region3: #{tpu_custom_call.1} parent=1 // pred_check_branch
      %24 = sbr.rel (0) target = $region5
    $region4: #{tpu_custom_call.1} parent=1 // pred_region
      %s26 = ssub.s32 32, 32
      %27 = vsyncadd [#allocation3], %s26
      %s29 = sshll.u32 [#allocation2], 4
      %s30 = int_to_ptr.vmem [resolvable:$true] %s29
      %32 = dma.hbm_to_vmem [thread:$0]  %s0, 32, %s30, [#allocation3]
    $region5: #{tpu_custom_call.1} parent=1 // pred_fallthru
      _
    // Predicated region
    $region6: #{tpu_custom_call.1} parent=1 // pred_check
      _
    $region7: #{tpu_custom_call.1} parent=1 // pred_check_branch
      %34 = sbr.rel (0) target = $region9
    $region8: #{tpu_custom_call.1} parent=1 // pred_region
      %s36 = ssub.s32 512, 512
      %37 = vsyncadd [#allocation6], %s36
      %s38 = sshll.u32 [#allocation5], 4
      %s39 = int_to_ptr.vmem [resolvable:$true] %s38
      %44 = dma.hbm_to_vmem [thread:$0]  %s1, 512, %s39, [#allocation6], 128, 128, 8
    $region9: #{tpu_custom_call.1} parent=1 // pred_fallthru
      _
    // Predicated region
    $region10: #{tpu_custom_call.1} parent=1 // pred_check
      _
    $region11: #{tpu_custom_call.1} parent=1 // pred_check_branch
      %46 = sbr.rel (0) target = $region13
    $region12: #{tpu_custom_call.1} parent=1 // pred_region
      %s48 = ssub.s32 16, 16
      %49 = vsyncadd [#allocation6], %s48
      %s51 = sshll.u32 [#allocation7], 4
      %s52 = int_to_ptr.vmem [resolvable:$true] %s51
      %54 = dma.hbm_to_vmem [thread:$0]  %s2, 16, %s52, [#allocation6]
    $region13: #{tpu_custom_call.1} parent=1 // pred_fallthru
      _
    // Predicated region
    $region14: #{tpu_custom_call.1} parent=1 // pred_check
      _
    $region15: #{tpu_custom_call.1} parent=1 // pred_check_branch
      %56 = sbr.rel (0) target = $region17
    $region16: #{tpu_custom_call.1} parent=1 // pred_region
      %s58 = ssub.s32 4096, 4096
      %59 = vsyncadd [#allocation9], %s58
      %s60 = sshll.u32 [#allocation8], 4
      %s61 = int_to_ptr.vmem [resolvable:$true] %s60
      %66 = dma.hbm_to_vmem [thread:$0]  %s3, 4096, %s61, [#allocation9], 256, 256, 16
    $region17: #{tpu_custom_call.1} parent=1 // pred_fallthru
      _
    // Predicated region
    $region18: #{tpu_custom_call.1} parent=1 // pred_check
      _
    $region19: #{tpu_custom_call.1} parent=1 // pred_check_branch
      %68 = sbr.rel (0) target = $region21
    $region20: #{tpu_custom_call.1} parent=1 // pred_region
      %s70 = ssub.s32 32, 32
      %71 = vsyncadd [#allocation9], %s70
      %s73 = sshll.u32 [#allocation10], 4
      %s74 = int_to_ptr.vmem [resolvable:$true] %s73
      %76 = dma.hbm_to_vmem [thread:$0]  %s4, 32, %s74, [#allocation9]
    $region21: #{tpu_custom_call.1} parent=1 // pred_fallthru
      _
    // Predicated region
    $region22: #{tpu_custom_call.1} parent=1 // pred_check
      _
    $region23: #{tpu_custom_call.1} parent=1 // pred_check_branch
      %78 = sbr.rel (0) target = $region25
    $region24: #{tpu_custom_call.1} parent=1 // pred_region
      %s80 = ssub.s32 16384, 16384
      %81 = vsyncadd [#allocation12], %s80
      %s82 = sshll.u32 [#allocation11], 4
      %s83 = int_to_ptr.vmem [resolvable:$true] %s82
      %88 = dma.hbm_to_vmem [thread:$0]  %s5, 16384, %s83, [#allocation12], 512, 512, 32
    $region25: #{tpu_custom_call.1} parent=1 // pred_fallthru
      _
    // Predicated region
    $region26: #{tpu_custom_call.1} parent=1 // pred_check
      _
    $region27: #{tpu_custom_call.1} parent=1 // pred_check_branch
      %90 = sbr.rel (0) target = $region29
    $region28: #{tpu_custom_call.1} parent=1 // pred_region
      %s92 = ssub.s32 64, 64
      %93 = vsyncadd [#allocation12], %s92
      %s95 = sshll.u32 [#allocation13], 4
      %s96 = int_to_ptr.vmem [resolvable:$true] %s95
      %98 = dma.hbm_to_vmem [thread:$0]  %s6, 64, %s96, [#allocation12]
    $region29: #{tpu_custom_call.1} parent=1 // pred_fallthru
      _
    // Predicated region
    $region30: #{tpu_custom_call.1} parent=1 // pred_check
      _
    $region31: #{tpu_custom_call.1} parent=1 // pred_check_branch
      %100 = sbr.rel (0) target = $region33
    $region32: #{tpu_custom_call.1} parent=1 // pred_region
      %s102 = ssub.s32 65536, 65536
      %103 = vsyncadd [#allocation15], %s102
      %s104 = sshll.u32 [#allocation14], 4
      %s105 = int_to_ptr.vmem [resolvable:$true] %s104
      %110 = dma.hbm_to_vmem [thread:$0]  %s7, 65536, %s105, [#allocation15], 1024, 1024, 64
    $region33: #{tpu_custom_call.1} parent=1 // pred_fallthru
      _
    // Predicated region
    $region34: #{tpu_custom_call.1} parent=1 // pred_check
      _
    $region35: #{tpu_custom_call.1} parent=1 // pred_check_branch
      %112 = sbr.rel (0) target = $region37
    $region36: #{tpu_custom_call.1} parent=1 // pred_region
      %s114 = ssub.s32 128, 128
      %115 = vsyncadd [#allocation15], %s114
      %s117 = sshll.u32 [#allocation16], 4
      %s118 = int_to_ptr.vmem [resolvable:$true] %s117
      %120 = dma.hbm_to_vmem [thread:$0]  %s8, 128, %s118, [#allocation15]
    $region37: #{tpu_custom_call.1} parent=1 // pred_fallthru
      _
    // Predicated region
    $region38: #{tpu_custom_call.1} parent=1 // pred_check
      _
    $region39: #{tpu_custom_call.1} parent=1 // pred_check_branch
      %122 = sbr.rel (0) target = $region41
    $region40: #{tpu_custom_call.1} parent=1 // pred_region
      %s124 = ssub.s32 16384, 16384
      %125 = vsyncadd [#allocation18], %s124
      %s126 = sshll.u32 [#allocation17], 4
      %s127 = int_to_ptr.vmem [resolvable:$true] %s126
      %132 = dma.hbm_to_vmem [thread:$0]  %s9, 16384, %s127, [#allocation18], 128, 128, 8
    $region41: #{tpu_custom_call.1} parent=1 // pred_fallthru
      _
    // Predicated region
    $region42: #{tpu_custom_call.1} parent=1 // pred_check
      _
    $region43: #{tpu_custom_call.1} parent=1 // pred_check_branch
      %134 = sbr.rel (0) target = $region45
    $region44: #{tpu_custom_call.1} parent=1 // pred_region
      %s136 = ssub.s32 16, 16
      %137 = vsyncadd [#allocation18], %s136
      %s139 = sshll.u32 [#allocation19], 4
      %s140 = int_to_ptr.vmem [resolvable:$true] %s139
      %142 = dma.hbm_to_vmem [thread:$0]  %s10, 16, %s140, [#allocation18]
    $region45: #{tpu_custom_call.1} parent=1 // pred_fallthru
      _
    // Predicated region
    $region46: #{tpu_custom_call.1} parent=1 // pred_check
      _
    $region47: #{tpu_custom_call.1} parent=1 // pred_check_branch
      %144 = sbr.rel (0) target = $region49
    $region48: #{tpu_custom_call.1} parent=1 // pred_region
      %145 = dma.done [#allocation3], 32
    $region49: #{tpu_custom_call.1} parent=1 // pred_fallthru
      _
    // Predicated region
    $region50: #{tpu_custom_call.1} parent=1 // pred_check
      _
    $region51: #{tpu_custom_call.1} parent=1 // pred_check_branch
      %147 = sbr.rel (0) target = $region53
    $region52: #{tpu_custom_call.1} parent=1 // pred_region
      %148 = dma.done [#allocation6], 512
    $region53: #{tpu_custom_call.1} parent=1 // pred_fallthru
      _
    // Predicated region
    $region54: #{tpu_custom_call.1} parent=1 // pred_check
      _
    $region55: #{tpu_custom_call.1} parent=1 // pred_check_branch
      %150 = sbr.rel (0) target = $region57
    $region56: #{tpu_custom_call.1} parent=1 // pred_region
      %151 = dma.done [#allocation6], 16
    $region57: #{tpu_custom_call.1} parent=1 // pred_fallthru
      _
    // Predicated region
    $region58: #{tpu_custom_call.1} parent=1 // pred_check
      _
    $region59: #{tpu_custom_call.1} parent=1 // pred_check_branch
      %153 = sbr.rel (0) target = $region61
    $region60: #{tpu_custom_call.1} parent=1 // pred_region
      %154 = dma.done [#allocation9], 4096
    $region61: #{tpu_custom_call.1} parent=1 // pred_fallthru
      _
    // Predicated region
    $region62: #{tpu_custom_call.1} parent=1 // pred_check
      _
    $region63: #{tpu_custom_call.1} parent=1 // pred_check_branch
      %156 = sbr.rel (0) target = $region65
    $region64: #{tpu_custom_call.1} parent=1 // pred_region
      %157 = dma.done [#allocation9], 32
    $region65: #{tpu_custom_call.1} parent=1 // pred_fallthru
      _
    // Predicated region
    $region66: #{tpu_custom_call.1} parent=1 // pred_check
      _
    $region67: #{tpu_custom_call.1} parent=1 // pred_check_branch
      %159 = sbr.rel (0) target = $region69
    $region68: #{tpu_custom_call.1} parent=1 // pred_region
      %160 = dma.done [#allocation12], 16384
    $region69: #{tpu_custom_call.1} parent=1 // pred_fallthru
      _
    // Predicated region
    $region70: #{tpu_custom_call.1} parent=1 // pred_check
      _
    $region71: #{tpu_custom_call.1} parent=1 // pred_check_branch
      %162 = sbr.rel (0) target = $region73
    $region72: #{tpu_custom_call.1} parent=1 // pred_region
      %163 = dma.done [#allocation12], 64
    $region73: #{tpu_custom_call.1} parent=1 // pred_fallthru
      _
    // Predicated region
    $region74: #{tpu_custom_call.1} parent=1 // pred_check
      _
    $region75: #{tpu_custom_call.1} parent=1 // pred_check_branch
      %165 = sbr.rel (0) target = $region77
    $region76: #{tpu_custom_call.1} parent=1 // pred_region
      %166 = dma.done [#allocation15], 65536
    $region77: #{tpu_custom_call.1} parent=1 // pred_fallthru
      _
    // Predicated region
    $region78: #{tpu_custom_call.1} parent=1 // pred_check
      _
    $region79: #{tpu_custom_call.1} parent=1 // pred_check_branch
      %168 = sbr.rel (0) target = $region81
    $region80: #{tpu_custom_call.1} parent=1 // pred_region
      %169 = dma.done [#allocation15], 128
    $region81: #{tpu_custom_call.1} parent=1 // pred_fallthru
      _
    // Predicated region
    $region82: #{tpu_custom_call.1} parent=1 // pred_check
      _
    $region83: #{tpu_custom_call.1} parent=1 // pred_check_branch
      %171 = sbr.rel (0) target = $region85
    $region84: #{tpu_custom_call.1} parent=1 // pred_region
      %172 = dma.done [#allocation18], 16384
    $region85: #{tpu_custom_call.1} parent=1 // pred_fallthru
      _
    // Predicated region
    $region86: #{tpu_custom_call.1} parent=1 // pred_check
      _
    $region87: #{tpu_custom_call.1} parent=1 // pred_check_branch
      %174 = sbr.rel (0) target = $region89
    $region88: #{tpu_custom_call.1} parent=1 // pred_region
      %175 = dma.done [#allocation18], 16
    $region89: #{tpu_custom_call.1} parent=1 // pred_fallthru
      _
    %v176 = vld [vmem:[#allocation2] sm:$0x3]
    %v177 = vld [vmem:[#allocation5] sm:$0xff]
    %v178 = vld [vmem:[#allocation5 + $0x8] sm:$0xff]
    %v179 = vld [vmem:[#allocation5 + $0x10] sm:$0xff]
    %v180 = vld [vmem:[#allocation5 + $0x18] sm:$0xff]
    %v181 = vld [vmem:[#allocation7] sm:$0x1]
    %v183 = vlaneseq
    %v184 = vshrl.u32 %v183, 7
    %v185 = vsub.s32 0, %v184
    %v186 = vrot.slane %v181, %v185
    %vm188 = vcmask 261120
    %v190 = vsel %vm188, %v176, 0
    %192 = vmatprep.subr.mxu0 0.0
    %193 = vmatpush1.msra.mxu0 %v177
    %194 = vmatprep.subr.mxu0 0.0
    %195 = vmatpush1.msra.mxu0 %v178
    %196 = vmatprep.subr.mxu0 0.0
    %197 = vmatpush1.msra.mxu0 %v179
    %198 = vmatprep.subr.mxu0 0.0
    %199 = vmatpush1.msra.mxu0 %v180
    %200 = vmatprep.subr.mxu0 0.0
    %201 = vmatpush1.msra.mxu0 0.0
    %202 = vmatprep.subr.mxu0 0.0
    %203 = vmatpush1.msra.mxu0 0.0
    %204 = vmatprep.subr.mxu0 0.0
    %205 = vmatpush1.msra.mxu0 0.0
    %206 = vmatprep.subr.mxu0 0.0
    %207 = vmatpush1.msra.mxu0 0.0
    %208 = vmatprep.subr.mxu0 0.0
    %209 = vmatpush1.msra.mxu0 0.0
    %210 = vmatprep.subr.mxu0 0.0
    %211 = vmatpush1.msra.mxu0 0.0
    %212 = vmatprep.subr.mxu0 0.0
    %213 = vmatpush1.msra.mxu0 0.0
    %214 = vmatprep.subr.mxu0 0.0
    %215 = vmatpush1.msra.mxu0 0.0
    %216 = vmatprep.subr.mxu0 0.0
    %217 = vmatpush1.msra.mxu0 0.0
    %218 = vmatprep.subr.mxu0 0.0
    %219 = vmatpush1.msra.mxu0 0.0
    %220 = vmatprep.subr.mxu0 0.0
    %221 = vmatpush1.msra.mxu0 0.0
    %222 = vmatprep.subr.mxu0 0.0
    %223 = vmatpush1.msra.mxu0 0.0
    %224 = vmatprep.subr.mxu0 0.0
    %225 = vmatpush1.msra.mxu0 0.0
    %226 = vmatprep.subr.mxu0 0.0
    %227 = vmatpush1.msra.mxu0 0.0
    %228 = vmatprep.subr.mxu0 0.0
    %229 = vmatpush1.msra.mxu0 0.0
    %230 = vmatprep.subr.mxu0 0.0
    %231 = vmatpush1.msra.mxu0 0.0
    %232 = vmatprep.subr.mxu0 0.0
    %233 = vmatpush1.msra.mxu0 0.0
    %234 = vmatprep.subr.mxu0 0.0
    %235 = vmatpush1.msra.mxu0 0.0
    %236 = vmatprep.subr.mxu0 0.0
    %237 = vmatpush1.msra.mxu0 0.0
    %238 = vmatprep.subr.mxu0 0.0
    %239 = vmatpush1.msra.mxu0 0.0
    %240 = vmatprep.subr.mxu0 0.0
    %241 = vmatpush1.msra.mxu0 0.0
    %242 = vmatprep.subr.mxu0 0.0
    %243 = vmatpush1.msra.mxu0 0.0
    %244 = vmatprep.subr.mxu0 0.0
    %245 = vmatpush1.msra.mxu0 0.0
    %246 = vmatprep.subr.mxu0 0.0
    %247 = vmatpush1.msra.mxu0 0.0
    %248 = vmatprep.subr.mxu0 0.0
    %249 = vmatpush1.msra.mxu0 0.0
    %250 = vmatprep.subr.mxu0 0.0
    %251 = vmatpush1.msra.mxu0 0.0
    %252 = vmatprep.subr.mxu0 0.0
    %253 = vmatpush1.msra.mxu0 0.0
    %254 = vmatprep.subr.mxu0 0.0
    %255 = vmatpush1.msra.mxu0 0.0
    %256 = vmatprep.mubr.f32.mxu0 0.0
    %257 = vmatmul.mubr.f32.gmra.mrb[0].mxu0 %v190
    %v258 = vpop.f32.mrb[0].mxu0
    %v259 = vadd.f32 %v186, %v258
    %v260 = vpop.f32.mrb[0].mxu0
    %261 = vdwg.mxu0
    %vm262 = vcmp.gt.f32.partialorder %v259, 0.0
    %v263 = vmul.f32 %v259, 0.2
    %v264 = vsel %vm262, %v259, %v263
    %v265 = vld [vmem:[#allocation8] sm:$0xff]
    %v266 = vld [vmem:[#allocation8 + $0x8] sm:$0xff]
    %v267 = vld [vmem:[#allocation8 + $0x10] sm:$0xff]
    %v268 = vld [vmem:[#allocation8 + $0x18] sm:$0xff]
    %v269 = vld [vmem:[#allocation8 + $0x20] sm:$0xff]
    %v270 = vld [vmem:[#allocation8 + $0x28] sm:$0xff]
    %v271 = vld [vmem:[#allocation8 + $0x30] sm:$0xff]
    %v272 = vld [vmem:[#allocation8 + $0x38] sm:$0xff]
    %v273 = vld [vmem:[#allocation8 + $0x40] sm:$0xff]
    %v274 = vld [vmem:[#allocation8 + $0x48] sm:$0xff]
    %v275 = vld [vmem:[#allocation8 + $0x50] sm:$0xff]
    %v276 = vld [vmem:[#allocation8 + $0x58] sm:$0xff]
    %v277 = vld [vmem:[#allocation8 + $0x60] sm:$0xff]
    %v278 = vld [vmem:[#allocation8 + $0x68] sm:$0xff]
    %v279 = vld [vmem:[#allocation8 + $0x70] sm:$0xff]
    %v280 = vld [vmem:[#allocation8 + $0x78] sm:$0xff]
    %v281 = vld [vmem:[#allocation8 + $0x80] sm:$0xff]
    %v282 = vld [vmem:[#allocation8 + $0x88] sm:$0xff]
    %v283 = vld [vmem:[#allocation8 + $0x90] sm:$0xff]
    %v284 = vld [vmem:[#allocation8 + $0x98] sm:$0xff]
    %v285 = vld [vmem:[#allocation8 + $0xa0] sm:$0xff]
    %v286 = vld [vmem:[#allocation8 + $0xa8] sm:$0xff]
    %v287 = vld [vmem:[#allocation8 + $0xb0] sm:$0xff]
    %v288 = vld [vmem:[#allocation8 + $0xb8] sm:$0xff]
    %v289 = vld [vmem:[#allocation8 + $0xc0] sm:$0xff]
    %v290 = vld [vmem:[#allocation8 + $0xc8] sm:$0xff]
    %v291 = vld [vmem:[#allocation8 + $0xd0] sm:$0xff]
    %v292 = vld [vmem:[#allocation8 + $0xd8] sm:$0xff]
    %v293 = vld [vmem:[#allocation8 + $0xe0] sm:$0xff]
    %v294 = vld [vmem:[#allocation8 + $0xe8] sm:$0xff]
    %v295 = vld [vmem:[#allocation8 + $0xf0] sm:$0xff]
    %v296 = vld [vmem:[#allocation8 + $0xf8] sm:$0xff]
    %v297 = vld [vmem:[#allocation10] sm:$0x3]
    %v299 = vlaneseq
    %v300 = vshrl.u32 %v299, 7
    %v301 = vsub.s32 0, %v300
    %v302 = vrot.slane %v297, %v301
    %v303 = vlaneseq
    %v304 = vshrl.u32 %v303, 7
    %v305 = vsub.s32 1, %v304
    %v306 = vrot.slane %v297, %v305
    %309 = vmatprep.subr.mxu0 %v266
    %310 = vmatpush1.msra.mxu0 %v265
    %311 = vmatprep.subr.mxu0 %v268
    %312 = vmatpush1.msra.mxu0 %v267
    %313 = vmatprep.subr.mxu0 %v270
    %314 = vmatpush1.msra.mxu0 %v269
    %315 = vmatprep.subr.mxu0 %v272
    %316 = vmatpush1.msra.mxu0 %v271
    %317 = vmatprep.subr.mxu0 %v274
    %318 = vmatpush1.msra.mxu0 %v273
    %319 = vmatprep.subr.mxu0 %v276
    %320 = vmatpush1.msra.mxu0 %v275
    %321 = vmatprep.subr.mxu0 %v278
    %322 = vmatpush1.msra.mxu0 %v277
    %323 = vmatprep.subr.mxu0 %v280
    %324 = vmatpush1.msra.mxu0 %v279
    %325 = vmatprep.subr.mxu0 %v282
    %326 = vmatpush1.msra.mxu0 %v281
    %327 = vmatprep.subr.mxu0 %v284
    %328 = vmatpush1.msra.mxu0 %v283
    %329 = vmatprep.subr.mxu0 %v286
    %330 = vmatpush1.msra.mxu0 %v285
    %331 = vmatprep.subr.mxu0 %v288
    %332 = vmatpush1.msra.mxu0 %v287
    %333 = vmatprep.subr.mxu0 %v290
    %334 = vmatpush1.msra.mxu0 %v289
    %335 = vmatprep.subr.mxu0 %v292
    %336 = vmatpush1.msra.mxu0 %v291
    %337 = vmatprep.subr.mxu0 %v294
    %338 = vmatpush1.msra.mxu0 %v293
    %339 = vmatprep.subr.mxu0 %v296
    %340 = vmatpush1.msra.mxu0 %v295
    %341 = vmatprep.subr.mxu0 0.0
    %342 = vmatpush1.msra.mxu0 0.0
    %343 = vmatprep.subr.mxu0 0.0
    %344 = vmatpush1.msra.mxu0 0.0
    %345 = vmatprep.subr.mxu0 0.0
    %346 = vmatpush1.msra.mxu0 0.0
    %347 = vmatprep.subr.mxu0 0.0
    %348 = vmatpush1.msra.mxu0 0.0
    %349 = vmatprep.subr.mxu0 0.0
    %350 = vmatpush1.msra.mxu0 0.0
    %351 = vmatprep.subr.mxu0 0.0
    %352 = vmatpush1.msra.mxu0 0.0
    %353 = vmatprep.subr.mxu0 0.0
    %354 = vmatpush1.msra.mxu0 0.0
    %355 = vmatprep.subr.mxu0 0.0
    %356 = vmatpush1.msra.mxu0 0.0
    %357 = vmatprep.subr.mxu0 0.0
    %358 = vmatpush1.msra.mxu0 0.0
    %359 = vmatprep.subr.mxu0 0.0
    %360 = vmatpush1.msra.mxu0 0.0
    %361 = vmatprep.subr.mxu0 0.0
    %362 = vmatpush1.msra.mxu0 0.0
    %363 = vmatprep.subr.mxu0 0.0
    %364 = vmatpush1.msra.mxu0 0.0
    %365 = vmatprep.subr.mxu0 0.0
    %366 = vmatpush1.msra.mxu0 0.0
    %367 = vmatprep.subr.mxu0 0.0
    %368 = vmatpush1.msra.mxu0 0.0
    %369 = vmatprep.subr.mxu0 0.0
    %370 = vmatpush1.msra.mxu0 0.0
    %371 = vmatprep.subr.mxu0 0.0
    %372 = vmatpush1.msra.mxu0 0.0
    %373 = vmatprep.mubr.f32.mxu0 0.0
    %374 = vmatmul.mubr.f32.gmra.mrb[0].mxu0 %v264
    %v375 = vpop.f32.mrb[0].mxu0
    %v376 = vadd.f32 %v302, %v375
    %v377 = vpop.f32.mrb[0].mxu0
    %v378 = vadd.f32 %v306, %v377
    %379 = vdwg.mxu0
    %vm380 = vcmp.gt.f32.partialorder %v376, 0.0
    %vm381 = vcmp.gt.f32.partialorder %v378, 0.0
    %v382 = vmul.f32 %v376, 0.2
    %v383 = vmul.f32 %v378, 0.2
    %v384 = vsel %vm380, %v376, %v382
    %v385 = vsel %vm381, %v378, %v383
    %v386 = vld [vmem:[#allocation11] sm:$0xff]
    %v387 = vld [vmem:[#allocation11 + $0x8] sm:$0xff]
    %v388 = vld [vmem:[#allocation11 + $0x10] sm:$0xff]
    %v389 = vld [vmem:[#allocation11 + $0x18] sm:$0xff]
    %v390 = vld [vmem:[#allocation11 + $0x20] sm:$0xff]
    %v391 = vld [vmem:[#allocation11 + $0x28] sm:$0xff]
    %v392 = vld [vmem:[#allocation11 + $0x30] sm:$0xff]
    %v393 = vld [vmem:[#allocation11 + $0x38] sm:$0xff]
    %v394 = vld [vmem:[#allocation11 + $0x40] sm:$0xff]
    %v395 = vld [vmem:[#allocation11 + $0x48] sm:$0xff]
    %v396 = vld [vmem:[#allocation11 + $0x50] sm:$0xff]
    %v397 = vld [vmem:[#allocation11 + $0x58] sm:$0xff]
    %v398 = vld [vmem:[#allocation11 + $0x60] sm:$0xff]
    %v399 = vld [vmem:[#allocation11 + $0x68] sm:$0xff]
    %v400 = vld [vmem:[#allocation11 + $0x70] sm:$0xff]
    %v401 = vld [vmem:[#allocation11 + $0x78] sm:$0xff]
    %v402 = vld [vmem:[#allocation11 + $0x80] sm:$0xff]
    %v403 = vld [vmem:[#allocation11 + $0x88] sm:$0xff]
    %v404 = vld [vmem:[#allocation11 + $0x90] sm:$0xff]
    %v405 = vld [vmem:[#allocation11 + $0x98] sm:$0xff]
    %v406 = vld [vmem:[#allocation11 + $0xa0] sm:$0xff]
    %v407 = vld [vmem:[#allocation11 + $0xa8] sm:$0xff]
    %v408 = vld [vmem:[#allocation11 + $0xb0] sm:$0xff]
    %v409 = vld [vmem:[#allocation11 + $0xb8] sm:$0xff]
    %v410 = vld [vmem:[#allocation11 + $0xc0] sm:$0xff]
    %v411 = vld [vmem:[#allocation11 + $0xc8] sm:$0xff]
    %v412 = vld [vmem:[#allocation11 + $0xd0] sm:$0xff]
    %v413 = vld [vmem:[#allocation11 + $0xd8] sm:$0xff]
    %v414 = vld [vmem:[#allocation11 + $0xe0] sm:$0xff]
    %v415 = vld [vmem:[#allocation11 + $0xe8] sm:$0xff]
    %v416 = vld [vmem:[#allocation11 + $0xf0] sm:$0xff]
    %v417 = vld [vmem:[#allocation11 + $0xf8] sm:$0xff]
    %v418 = vld [vmem:[#allocation11 + $0x100] sm:$0xff]
    %v419 = vld [vmem:[#allocation11 + $0x108] sm:$0xff]
    %v420 = vld [vmem:[#allocation11 + $0x110] sm:$0xff]
    %v421 = vld [vmem:[#allocation11 + $0x118] sm:$0xff]
    %v422 = vld [vmem:[#allocation11 + $0x120] sm:$0xff]
    %v423 = vld [vmem:[#allocation11 + $0x128] sm:$0xff]
    %v424 = vld [vmem:[#allocation11 + $0x130] sm:$0xff]
    %v425 = vld [vmem:[#allocation11 + $0x138] sm:$0xff]
    %v426 = vld [vmem:[#allocation11 + $0x140] sm:$0xff]
    %v427 = vld [vmem:[#allocation11 + $0x148] sm:$0xff]
    %v428 = vld [vmem:[#allocation11 + $0x150] sm:$0xff]
    %v429 = vld [vmem:[#allocation11 + $0x158] sm:$0xff]
    %v430 = vld [vmem:[#allocation11 + $0x160] sm:$0xff]
    %v431 = vld [vmem:[#allocation11 + $0x168] sm:$0xff]
    %v432 = vld [vmem:[#allocation11 + $0x170] sm:$0xff]
    %v433 = vld [vmem:[#allocation11 + $0x178] sm:$0xff]
    %v434 = vld [vmem:[#allocation11 + $0x180] sm:$0xff]
    %v435 = vld [vmem:[#allocation11 + $0x188] sm:$0xff]
    %v436 = vld [vmem:[#allocation11 + $0x190] sm:$0xff]
    %v437 = vld [vmem:[#allocation11 + $0x198] sm:$0xff]
    %v438 = vld [vmem:[#allocation11 + $0x1a0] sm:$0xff]
    %v439 = vld [vmem:[#allocation11 + $0x1a8] sm:$0xff]
    %v440 = vld [vmem:[#allocation11 + $0x1b0] sm:$0xff]
    %v441 = vld [vmem:[#allocation11 + $0x1b8] sm:$0xff]
    %v442 = vld [vmem:[#allocation11 + $0x1c0] sm:$0xff]
    %v443 = vld [vmem:[#allocation11 + $0x1c8] sm:$0xff]
    %v444 = vld [vmem:[#allocation11 + $0x1d0] sm:$0xff]
    %v445 = vld [vmem:[#allocation11 + $0x1d8] sm:$0xff]
    %v446 = vld [vmem:[#allocation11 + $0x1e0] sm:$0xff]
    %v447 = vld [vmem:[#allocation11 + $0x1e8] sm:$0xff]
    %v448 = vld [vmem:[#allocation11 + $0x1f0] sm:$0xff]
    %v449 = vld [vmem:[#allocation11 + $0x1f8] sm:$0xff]
    %v450 = vld [vmem:[#allocation11 + $0x200] sm:$0xff]
    %v451 = vld [vmem:[#allocation11 + $0x208] sm:$0xff]
    %v452 = vld [vmem:[#allocation11 + $0x210] sm:$0xff]
    %v453 = vld [vmem:[#allocation11 + $0x218] sm:$0xff]
    %v454 = vld [vmem:[#allocation11 + $0x220] sm:$0xff]
    %v455 = vld [vmem:[#allocation11 + $0x228] sm:$0xff]
    %v456 = vld [vmem:[#allocation11 + $0x230] sm:$0xff]
    %v457 = vld [vmem:[#allocation11 + $0x238] sm:$0xff]
    %v458 = vld [vmem:[#allocation11 + $0x240] sm:$0xff]
    %v459 = vld [vmem:[#allocation11 + $0x248] sm:$0xff]
    %v460 = vld [vmem:[#allocation11 + $0x250] sm:$0xff]
    %v461 = vld [vmem:[#allocation11 + $0x258] sm:$0xff]
    %v462 = vld [vmem:[#allocation11 + $0x260] sm:$0xff]
    %v463 = vld [vmem:[#allocation11 + $0x268] sm:$0xff]
    %v464 = vld [vmem:[#allocation11 + $0x270] sm:$0xff]
    %v465 = vld [vmem:[#allocation11 + $0x278] sm:$0xff]
    %v466 = vld [vmem:[#allocation11 + $0x280] sm:$0xff]
    %v467 = vld [vmem:[#allocation11 + $0x288] sm:$0xff]
    %v468 = vld [vmem:[#allocation11 + $0x290] sm:$0xff]
    %v469 = vld [vmem:[#allocation11 + $0x298] sm:$0xff]
    %v470 = vld [vmem:[#allocation11 + $0x2a0] sm:$0xff]
    %v471 = vld [vmem:[#allocation11 + $0x2a8] sm:$0xff]
    %v472 = vld [vmem:[#allocation11 + $0x2b0] sm:$0xff]
    %v473 = vld [vmem:[#allocation11 + $0x2b8] sm:$0xff]
    %v474 = vld [vmem:[#allocation11 + $0x2c0] sm:$0xff]
    %v475 = vld [vmem:[#allocation11 + $0x2c8] sm:$0xff]
    %v476 = vld [vmem:[#allocation11 + $0x2d0] sm:$0xff]
    %v477 = vld [vmem:[#allocation11 + $0x2d8] sm:$0xff]
    %v478 = vld [vmem:[#allocation11 + $0x2e0] sm:$0xff]
    %v479 = vld [vmem:[#allocation11 + $0x2e8] sm:$0xff]
    %v480 = vld [vmem:[#allocation11 + $0x2f0] sm:$0xff]
    %v481 = vld [vmem:[#allocation11 + $0x2f8] sm:$0xff]
    %v482 = vld [vmem:[#allocation11 + $0x300] sm:$0xff]
    %v483 = vld [vmem:[#allocation11 + $0x308] sm:$0xff]
    %v484 = vld [vmem:[#allocation11 + $0x310] sm:$0xff]
    %v485 = vld [vmem:[#allocation11 + $0x318] sm:$0xff]
    %v486 = vld [vmem:[#allocation11 + $0x320] sm:$0xff]
    %v487 = vld [vmem:[#allocation11 + $0x328] sm:$0xff]
    %v488 = vld [vmem:[#allocation11 + $0x330] sm:$0xff]
    %v489 = vld [vmem:[#allocation11 + $0x338] sm:$0xff]
    %v490 = vld [vmem:[#allocation11 + $0x340] sm:$0xff]
    %v491 = vld [vmem:[#allocation11 + $0x348] sm:$0xff]
    %v492 = vld [vmem:[#allocation11 + $0x350] sm:$0xff]
    %v493 = vld [vmem:[#allocation11 + $0x358] sm:$0xff]
    %v494 = vld [vmem:[#allocation11 + $0x360] sm:$0xff]
    %v495 = vld [vmem:[#allocation11 + $0x368] sm:$0xff]
    %v496 = vld [vmem:[#allocation11 + $0x370] sm:$0xff]
    %v497 = vld [vmem:[#allocation11 + $0x378] sm:$0xff]
    %v498 = vld [vmem:[#allocation11 + $0x380] sm:$0xff]
    %v499 = vld [vmem:[#allocation11 + $0x388] sm:$0xff]
    %v500 = vld [vmem:[#allocation11 + $0x390] sm:$0xff]
    %v501 = vld [vmem:[#allocation11 + $0x398] sm:$0xff]
    %v502 = vld [vmem:[#allocation11 + $0x3a0] sm:$0xff]
    %v503 = vld [vmem:[#allocation11 + $0x3a8] sm:$0xff]
    %v504 = vld [vmem:[#allocation11 + $0x3b0] sm:$0xff]
    %v505 = vld [vmem:[#allocation11 + $0x3b8] sm:$0xff]
    %v506 = vld [vmem:[#allocation11 + $0x3c0] sm:$0xff]
    %v507 = vld [vmem:[#allocation11 + $0x3c8] sm:$0xff]
    %v508 = vld [vmem:[#allocation11 + $0x3d0] sm:$0xff]
    %v509 = vld [vmem:[#allocation11 + $0x3d8] sm:$0xff]
    %v510 = vld [vmem:[#allocation11 + $0x3e0] sm:$0xff]
    %v511 = vld [vmem:[#allocation11 + $0x3e8] sm:$0xff]
    %v512 = vld [vmem:[#allocation11 + $0x3f0] sm:$0xff]
    %v513 = vld [vmem:[#allocation11 + $0x3f8] sm:$0xff]
    %v514 = vld [vmem:[#allocation13] sm:$0xf]
    %v516 = vlaneseq
    %v517 = vshrl.u32 %v516, 7
    %v518 = vsub.s32 0, %v517
    %v519 = vrot.slane %v514, %v518
    %v520 = vlaneseq
    %v521 = vshrl.u32 %v520, 7
    %v522 = vsub.s32 1, %v521
    %v523 = vrot.slane %v514, %v522
    %v524 = vlaneseq
    %v525 = vshrl.u32 %v524, 7
    %v526 = vsub.s32 2, %v525
    %v527 = vrot.slane %v514, %v526
    %v528 = vlaneseq
    %v529 = vshrl.u32 %v528, 7
    %v530 = vsub.s32 3, %v529
    %v531 = vrot.slane %v514, %v530
    %536 = vmatprep.subr.mxu0 %v387
    %537 = vmatpush1.msra.mxu0 %v386
    %538 = vmatprep.subr.mxu0 %v391
    %539 = vmatpush1.msra.mxu0 %v390
    %540 = vmatprep.subr.mxu0 %v395
    %541 = vmatpush1.msra.mxu0 %v394
    %542 = vmatprep.subr.mxu0 %v399
    %543 = vmatpush1.msra.mxu0 %v398
    %544 = vmatprep.subr.mxu0 %v403
    %545 = vmatpush1.msra.mxu0 %v402
    %546 = vmatprep.subr.mxu0 %v407
    %547 = vmatpush1.msra.mxu0 %v406
    %548 = vmatprep.subr.mxu0 %v411
    %549 = vmatpush1.msra.mxu0 %v410
    %550 = vmatprep.subr.mxu0 %v415
    %551 = vmatpush1.msra.mxu0 %v414
    %552 = vmatprep.subr.mxu0 %v419
    %553 = vmatpush1.msra.mxu0 %v418
    %554 = vmatprep.subr.mxu0 %v423
    %555 = vmatpush1.msra.mxu0 %v422
    %556 = vmatprep.subr.mxu0 %v427
    %557 = vmatpush1.msra.mxu0 %v426
    %558 = vmatprep.subr.mxu0 %v431
    %559 = vmatpush1.msra.mxu0 %v430
    %560 = vmatprep.subr.mxu0 %v435
    %561 = vmatpush1.msra.mxu0 %v434
    %562 = vmatprep.subr.mxu0 %v439
    %563 = vmatpush1.msra.mxu0 %v438
    %564 = vmatprep.subr.mxu0 %v443
    %565 = vmatpush1.msra.mxu0 %v442
    %566 = vmatprep.subr.mxu0 %v447
    %567 = vmatpush1.msra.mxu0 %v446
    %568 = vmatprep.subr.mxu0 %v451
    %569 = vmatpush1.msra.mxu0 %v450
    %570 = vmatprep.subr.mxu0 %v455
    %571 = vmatpush1.msra.mxu0 %v454
    %572 = vmatprep.subr.mxu0 %v459
    %573 = vmatpush1.msra.mxu0 %v458
    %574 = vmatprep.subr.mxu0 %v463
    %575 = vmatpush1.msra.mxu0 %v462
    %576 = vmatprep.subr.mxu0 %v467
    %577 = vmatpush1.msra.mxu0 %v466
    %578 = vmatprep.subr.mxu0 %v471
    %579 = vmatpush1.msra.mxu0 %v470
    %580 = vmatprep.subr.mxu0 %v475
    %581 = vmatpush1.msra.mxu0 %v474
    %582 = vmatprep.subr.mxu0 %v479
    %583 = vmatpush1.msra.mxu0 %v478
    %584 = vmatprep.subr.mxu0 %v483
    %585 = vmatpush1.msra.mxu0 %v482
    %586 = vmatprep.subr.mxu0 %v487
    %587 = vmatpush1.msra.mxu0 %v486
    %588 = vmatprep.subr.mxu0 %v491
    %589 = vmatpush1.msra.mxu0 %v490
    %590 = vmatprep.subr.mxu0 %v495
    %591 = vmatpush1.msra.mxu0 %v494
    %592 = vmatprep.subr.mxu0 %v499
    %593 = vmatpush1.msra.mxu0 %v498
    %594 = vmatprep.subr.mxu0 %v503
    %595 = vmatpush1.msra.mxu0 %v502
    %596 = vmatprep.subr.mxu0 %v507
    %597 = vmatpush1.msra.mxu0 %v506
    %598 = vmatprep.subr.mxu0 %v511
    %599 = vmatpush1.msra.mxu0 %v510
    %600 = vmatprep.mubr.f32.mxu0 %v385
    %601 = vmatmul.mubr.f32.gmra.mrb[0].mxu0 %v384
    %v602 = vpop.f32.mrb[0].mxu0
    %v603 = vadd.f32 %v519, %v602
    %v604 = vpop.f32.mrb[0].mxu0
    %v605 = vadd.f32 %v523, %v604
    %606 = vdwg.mxu0
    %607 = vmatprep.subr.mxu0 %v389
    %608 = vmatpush1.msra.mxu0 %v388
    %609 = vmatprep.subr.mxu0 %v393
    %610 = vmatpush1.msra.mxu0 %v392
    %611 = vmatprep.subr.mxu0 %v397
    %612 = vmatpush1.msra.mxu0 %v396
    %613 = vmatprep.subr.mxu0 %v401
    %614 = vmatpush1.msra.mxu0 %v400
    %615 = vmatprep.subr.mxu0 %v405
    %616 = vmatpush1.msra.mxu0 %v404
    %617 = vmatprep.subr.mxu0 %v409
    %618 = vmatpush1.msra.mxu0 %v408
    %619 = vmatprep.subr.mxu0 %v413
    %620 = vmatpush1.msra.mxu0 %v412
    %621 = vmatprep.subr.mxu0 %v417
    %622 = vmatpush1.msra.mxu0 %v416
    %623 = vmatprep.subr.mxu0 %v421
    %624 = vmatpush1.msra.mxu0 %v420
    %625 = vmatprep.subr.mxu0 %v425
    %626 = vmatpush1.msra.mxu0 %v424
    %627 = vmatprep.subr.mxu0 %v429
    %628 = vmatpush1.msra.mxu0 %v428
    %629 = vmatprep.subr.mxu0 %v433
    %630 = vmatpush1.msra.mxu0 %v432
    %631 = vmatprep.subr.mxu0 %v437
    %632 = vmatpush1.msra.mxu0 %v436
    %633 = vmatprep.subr.mxu0 %v441
    %634 = vmatpush1.msra.mxu0 %v440
    %635 = vmatprep.subr.mxu0 %v445
    %636 = vmatpush1.msra.mxu0 %v444
    %637 = vmatprep.subr.mxu0 %v449
    %638 = vmatpush1.msra.mxu0 %v448
    %639 = vmatprep.subr.mxu0 %v453
    %640 = vmatpush1.msra.mxu0 %v452
    %641 = vmatprep.subr.mxu0 %v457
    %642 = vmatpush1.msra.mxu0 %v456
    %643 = vmatprep.subr.mxu0 %v461
    %644 = vmatpush1.msra.mxu0 %v460
    %645 = vmatprep.subr.mxu0 %v465
    %646 = vmatpush1.msra.mxu0 %v464
    %647 = vmatprep.subr.mxu0 %v469
    %648 = vmatpush1.msra.mxu0 %v468
    %649 = vmatprep.subr.mxu0 %v473
    %650 = vmatpush1.msra.mxu0 %v472
    %651 = vmatprep.subr.mxu0 %v477
    %652 = vmatpush1.msra.mxu0 %v476
    %653 = vmatprep.subr.mxu0 %v481
    %654 = vmatpush1.msra.mxu0 %v480
    %655 = vmatprep.subr.mxu0 %v485
    %656 = vmatpush1.msra.mxu0 %v484
    %657 = vmatprep.subr.mxu0 %v489
    %658 = vmatpush1.msra.mxu0 %v488
    %659 = vmatprep.subr.mxu0 %v493
    %660 = vmatpush1.msra.mxu0 %v492
    %661 = vmatprep.subr.mxu0 %v497
    %662 = vmatpush1.msra.mxu0 %v496
    %663 = vmatprep.subr.mxu0 %v501
    %664 = vmatpush1.msra.mxu0 %v500
    %665 = vmatprep.subr.mxu0 %v505
    %666 = vmatpush1.msra.mxu0 %v504
    %667 = vmatprep.subr.mxu0 %v509
    %668 = vmatpush1.msra.mxu0 %v508
    %669 = vmatprep.subr.mxu0 %v513
    %670 = vmatpush1.msra.mxu0 %v512
    %671 = vmatprep.mubr.f32.mxu0 %v385
    %672 = vmatmul.mubr.f32.gmra.mrb[0].mxu0 %v384
    %v673 = vpop.f32.mrb[0].mxu0
    %v674 = vadd.f32 %v527, %v673
    %v675 = vpop.f32.mrb[0].mxu0
    %v676 = vadd.f32 %v531, %v675
    %677 = vdwg.mxu0
    %vm678 = vcmp.gt.f32.partialorder %v603, 0.0
    %vm679 = vcmp.gt.f32.partialorder %v605, 0.0
    %vm680 = vcmp.gt.f32.partialorder %v674, 0.0
    %vm681 = vcmp.gt.f32.partialorder %v676, 0.0
    %v682 = vmul.f32 %v603, 0.2
    %v683 = vmul.f32 %v605, 0.2
    %v684 = vmul.f32 %v674, 0.2
    %v685 = vmul.f32 %v676, 0.2
    %v686 = vsel %vm678, %v603, %v682
    %v687 = vsel %vm679, %v605, %v683
    %v688 = vsel %vm680, %v674, %v684
    %v689 = vsel %vm681, %v676, %v685
    %v690 = vld [vmem:[#allocation14] sm:$0xff]
    %v691 = vld [vmem:[#allocation14 + $0x8] sm:$0xff]
    %v692 = vld [vmem:[#allocation14 + $0x10] sm:$0xff]
    %v693 = vld [vmem:[#allocation14 + $0x18] sm:$0xff]
    %v694 = vld [vmem:[#allocation14 + $0x20] sm:$0xff]
    %v695 = vld [vmem:[#allocation14 + $0x28] sm:$0xff]
    %v696 = vld [vmem:[#allocation14 + $0x30] sm:$0xff]
    %v697 = vld [vmem:[#allocation14 + $0x38] sm:$0xff]
    %v698 = vld [vmem:[#allocation14 + $0x40] sm:$0xff]
    %v699 = vld [vmem:[#allocation14 + $0x48] sm:$0xff]
    %v700 = vld [vmem:[#allocation14 + $0x50] sm:$0xff]
    %v701 = vld [vmem:[#allocation14 + $0x58] sm:$0xff]
    %v702 = vld [vmem:[#allocation14 + $0x60] sm:$0xff]
    %v703 = vld [vmem:[#allocation14 + $0x68] sm:$0xff]
    %v704 = vld [vmem:[#allocation14 + $0x70] sm:$0xff]
    %v705 = vld [vmem:[#allocation14 + $0x78] sm:$0xff]
    %v706 = vld [vmem:[#allocation14 + $0x80] sm:$0xff]
    %v707 = vld [vmem:[#allocation14 + $0x88] sm:$0xff]
    %v708 = vld [vmem:[#allocation14 + $0x90] sm:$0xff]
    %v709 = vld [vmem:[#allocation14 + $0x98] sm:$0xff]
    %v710 = vld [vmem:[#allocation14 + $0xa0] sm:$0xff]
    %v711 = vld [vmem:[#allocation14 + $0xa8] sm:$0xff]
    %v712 = vld [vmem:[#allocation14 + $0xb0] sm:$0xff]
    %v713 = vld [vmem:[#allocation14 + $0xb8] sm:$0xff]
    %v714 = vld [vmem:[#allocation14 + $0xc0] sm:$0xff]
    %v715 = vld [vmem:[#allocation14 + $0xc8] sm:$0xff]
    %v716 = vld [vmem:[#allocation14 + $0xd0] sm:$0xff]
    %v717 = vld [vmem:[#allocation14 + $0xd8] sm:$0xff]
    %v718 = vld [vmem:[#allocation14 + $0xe0] sm:$0xff]
    %v719 = vld [vmem:[#allocation14 + $0xe8] sm:$0xff]
    %v720 = vld [vmem:[#allocation14 + $0xf0] sm:$0xff]
    %v721 = vld [vmem:[#allocation14 + $0xf8] sm:$0xff]
    %v722 = vld [vmem:[#allocation14 + $0x100] sm:$0xff]
    %v723 = vld [vmem:[#allocation14 + $0x108] sm:$0xff]
    %v724 = vld [vmem:[#allocation14 + $0x110] sm:$0xff]
    %v725 = vld [vmem:[#allocation14 + $0x118] sm:$0xff]
    %v726 = vld [vmem:[#allocation14 + $0x120] sm:$0xff]
    %v727 = vld [vmem:[#allocation14 + $0x128] sm:$0xff]
    %v728 = vld [vmem:[#allocation14 + $0x130] sm:$0xff]
    %v729 = vld [vmem:[#allocation14 + $0x138] sm:$0xff]
    %v730 = vld [vmem:[#allocation14 + $0x140] sm:$0xff]
    %v731 = vld [vmem:[#allocation14 + $0x148] sm:$0xff]
    %v732 = vld [vmem:[#allocation14 + $0x150] sm:$0xff]
    %v733 = vld [vmem:[#allocation14 + $0x158] sm:$0xff]
    %v734 = vld [vmem:[#allocation14 + $0x160] sm:$0xff]
    %v735 = vld [vmem:[#allocation14 + $0x168] sm:$0xff]
    %v736 = vld [vmem:[#allocation14 + $0x170] sm:$0xff]
    %v737 = vld [vmem:[#allocation14 + $0x178] sm:$0xff]
    %v738 = vld [vmem:[#allocation14 + $0x180] sm:$0xff]
    %v739 = vld [vmem:[#allocation14 + $0x188] sm:$0xff]
    %v740 = vld [vmem:[#allocation14 + $0x190] sm:$0xff]
    %v741 = vld [vmem:[#allocation14 + $0x198] sm:$0xff]
    %v742 = vld [vmem:[#allocation14 + $0x1a0] sm:$0xff]
    %v743 = vld [vmem:[#allocation14 + $0x1a8] sm:$0xff]
    %v744 = vld [vmem:[#allocation14 + $0x1b0] sm:$0xff]
    %v745 = vld [vmem:[#allocation14 + $0x1b8] sm:$0xff]
    %v746 = vld [vmem:[#allocation14 + $0x1c0] sm:$0xff]
    %v747 = vld [vmem:[#allocation14 + $0x1c8] sm:$0xff]
    %v748 = vld [vmem:[#allocation14 + $0x1d0] sm:$0xff]
    %v749 = vld [vmem:[#allocation14 + $0x1d8] sm:$0xff]
    %v750 = vld [vmem:[#allocation14 + $0x1e0] sm:$0xff]
    %v751 = vld [vmem:[#allocation14 + $0x1e8] sm:$0xff]
    %v752 = vld [vmem:[#allocation14 + $0x1f0] sm:$0xff]
    %v753 = vld [vmem:[#allocation14 + $0x1f8] sm:$0xff]
    %v754 = vld [vmem:[#allocation14 + $0x200] sm:$0xff]
    %v755 = vld [vmem:[#allocation14 + $0x208] sm:$0xff]
    %v756 = vld [vmem:[#allocation14 + $0x210] sm:$0xff]
    %v757 = vld [vmem:[#allocation14 + $0x218] sm:$0xff]
    %v758 = vld [vmem:[#allocation14 + $0x220] sm:$0xff]
    %v759 = vld [vmem:[#allocation14 + $0x228] sm:$0xff]
    %v760 = vld [vmem:[#allocation14 + $0x230] sm:$0xff]
    %v761 = vld [vmem:[#allocation14 + $0x238] sm:$0xff]
    %v762 = vld [vmem:[#allocation14 + $0x240] sm:$0xff]
    %v763 = vld [vmem:[#allocation14 + $0x248] sm:$0xff]
    %v764 = vld [vmem:[#allocation14 + $0x250] sm:$0xff]
    %v765 = vld [vmem:[#allocation14 + $0x258] sm:$0xff]
    %v766 = vld [vmem:[#allocation14 + $0x260] sm:$0xff]
    %v767 = vld [vmem:[#allocation14 + $0x268] sm:$0xff]
    %v768 = vld [vmem:[#allocation14 + $0x270] sm:$0xff]
    %v769 = vld [vmem:[#allocation14 + $0x278] sm:$0xff]
    %v770 = vld [vmem:[#allocation14 + $0x280] sm:$0xff]
    %v771 = vld [vmem:[#allocation14 + $0x288] sm:$0xff]
    %v772 = vld [vmem:[#allocation14 + $0x290] sm:$0xff]
    %v773 = vld [vmem:[#allocation14 + $0x298] sm:$0xff]
    %v774 = vld [vmem:[#allocation14 + $0x2a0] sm:$0xff]
    %v775 = vld [vmem:[#allocation14 + $0x2a8] sm:$0xff]
    %v776 = vld [vmem:[#allocation14 + $0x2b0] sm:$0xff]
    %v777 = vld [vmem:[#allocation14 + $0x2b8] sm:$0xff]
    %v778 = vld [vmem:[#allocation14 + $0x2c0] sm:$0xff]
    %v779 = vld [vmem:[#allocation14 + $0x2c8] sm:$0xff]
    %v780 = vld [vmem:[#allocation14 + $0x2d0] sm:$0xff]
    %v781 = vld [vmem:[#allocation14 + $0x2d8] sm:$0xff]
    %v782 = vld [vmem:[#allocation14 + $0x2e0] sm:$0xff]
    %v783 = vld [vmem:[#allocation14 + $0x2e8] sm:$0xff]
    %v784 = vld [vmem:[#allocation14 + $0x2f0] sm:$0xff]
    %v785 = vld [vmem:[#allocation14 + $0x2f8] sm:$0xff]
    %v786 = vld [vmem:[#allocation14 + $0x300] sm:$0xff]
    %v787 = vld [vmem:[#allocation14 + $0x308] sm:$0xff]
    %v788 = vld [vmem:[#allocation14 + $0x310] sm:$0xff]
    %v789 = vld [vmem:[#allocation14 + $0x318] sm:$0xff]
    %v790 = vld [vmem:[#allocation14 + $0x320] sm:$0xff]
    %v791 = vld [vmem:[#allocation14 + $0x328] sm:$0xff]
    %v792 = vld [vmem:[#allocation14 + $0x330] sm:$0xff]
    %v793 = vld [vmem:[#allocation14 + $0x338] sm:$0xff]
    %v794 = vld [vmem:[#allocation14 + $0x340] sm:$0xff]
    %v795 = vld [vmem:[#allocation14 + $0x348] sm:$0xff]
    %v796 = vld [vmem:[#allocation14 + $0x350] sm:$0xff]
    %v797 = vld [vmem:[#allocation14 + $0x358] sm:$0xff]
    %v798 = vld [vmem:[#allocation14 + $0x360] sm:$0xff]
    %v799 = vld [vmem:[#allocation14 + $0x368] sm:$0xff]
    %v800 = vld [vmem:[#allocation14 + $0x370] sm:$0xff]
    %v801 = vld [vmem:[#allocation14 + $0x378] sm:$0xff]
    %v802 = vld [vmem:[#allocation14 + $0x380] sm:$0xff]
    %v803 = vld [vmem:[#allocation14 + $0x388] sm:$0xff]
    %v804 = vld [vmem:[#allocation14 + $0x390] sm:$0xff]
    %v805 = vld [vmem:[#allocation14 + $0x398] sm:$0xff]
    %v806 = vld [vmem:[#allocation14 + $0x3a0] sm:$0xff]
    %v807 = vld [vmem:[#allocation14 + $0x3a8] sm:$0xff]
    %v808 = vld [vmem:[#allocation14 + $0x3b0] sm:$0xff]
    %v809 = vld [vmem:[#allocation14 + $0x3b8] sm:$0xff]
    %v810 = vld [vmem:[#allocation14 + $0x3c0] sm:$0xff]
    %v811 = vld [vmem:[#allocation14 + $0x3c8] sm:$0xff]
    %v812 = vld [vmem:[#allocation14 + $0x3d0] sm:$0xff]
    %v813 = vld [vmem:[#allocation14 + $0x3d8] sm:$0xff]
    %v814 = vld [vmem:[#allocation14 + $0x3e0] sm:$0xff]
    %v815 = vld [vmem:[#allocation14 + $0x3e8] sm:$0xff]
    %v816 = vld [vmem:[#allocation14 + $0x3f0] sm:$0xff]
    %v817 = vld [vmem:[#allocation14 + $0x3f8] sm:$0xff]
    %v818 = vld [vmem:[#allocation14 + $0x400] sm:$0xff]
    %v819 = vld [vmem:[#allocation14 + $0x408] sm:$0xff]
    %v820 = vld [vmem:[#allocation14 + $0x410] sm:$0xff]
    %v821 = vld [vmem:[#allocation14 + $0x418] sm:$0xff]
    %v822 = vld [vmem:[#allocation14 + $0x420] sm:$0xff]
    %v823 = vld [vmem:[#allocation14 + $0x428] sm:$0xff]
    %v824 = vld [vmem:[#allocation14 + $0x430] sm:$0xff]
    %v825 = vld [vmem:[#allocation14 + $0x438] sm:$0xff]
    %v826 = vld [vmem:[#allocation14 + $0x440] sm:$0xff]
    %v827 = vld [vmem:[#allocation14 + $0x448] sm:$0xff]
    %v828 = vld [vmem:[#allocation14 + $0x450] sm:$0xff]
    %v829 = vld [vmem:[#allocation14 + $0x458] sm:$0xff]
    %v830 = vld [vmem:[#allocation14 + $0x460] sm:$0xff]
    %v831 = vld [vmem:[#allocation14 + $0x468] sm:$0xff]
    %v832 = vld [vmem:[#allocation14 + $0x470] sm:$0xff]
    %v833 = vld [vmem:[#allocation14 + $0x478] sm:$0xff]
    %v834 = vld [vmem:[#allocation14 + $0x480] sm:$0xff]
    %v835 = vld [vmem:[#allocation14 + $0x488] sm:$0xff]
    %v836 = vld [vmem:[#allocation14 + $0x490] sm:$0xff]
    %v837 = vld [vmem:[#allocation14 + $0x498] sm:$0xff]
    %v838 = vld [vmem:[#allocation14 + $0x4a0] sm:$0xff]
    %v839 = vld [vmem:[#allocation14 + $0x4a8] sm:$0xff]
    %v840 = vld [vmem:[#allocation14 + $0x4b0] sm:$0xff]
    %v841 = vld [vmem:[#allocation14 + $0x4b8] sm:$0xff]
    %v842 = vld [vmem:[#allocation14 + $0x4c0] sm:$0xff]
    %v843 = vld [vmem:[#allocation14 + $0x4c8] sm:$0xff]
    %v844 = vld [vmem:[#allocation14 + $0x4d0] sm:$0xff]
    %v845 = vld [vmem:[#allocation14 + $0x4d8] sm:$0xff]
    %v846 = vld [vmem:[#allocation14 + $0x4e0] sm:$0xff]
    %v847 = vld [vmem:[#allocation14 + $0x4e8] sm:$0xff]
    %v848 = vld [vmem:[#allocation14 + $0x4f0] sm:$0xff]
    %v849 = vld [vmem:[#allocation14 + $0x4f8] sm:$0xff]
    %v850 = vld [vmem:[#allocation14 + $0x500] sm:$0xff]
    %v851 = vld [vmem:[#allocation14 + $0x508] sm:$0xff]
    %v852 = vld [vmem:[#allocation14 + $0x510] sm:$0xff]
    %v853 = vld [vmem:[#allocation14 + $0x518] sm:$0xff]
    %v854 = vld [vmem:[#allocation14 + $0x520] sm:$0xff]
    %v855 = vld [vmem:[#allocation14 + $0x528] sm:$0xff]
    %v856 = vld [vmem:[#allocation14 + $0x530] sm:$0xff]
    %v857 = vld [vmem:[#allocation14 + $0x538] sm:$0xff]
    %v858 = vld [vmem:[#allocation14 + $0x540] sm:$0xff]
    %v859 = vld [vmem:[#allocation14 + $0x548] sm:$0xff]
    %v860 = vld [vmem:[#allocation14 + $0x550] sm:$0xff]
    %v861 = vld [vmem:[#allocation14 + $0x558] sm:$0xff]
    %v862 = vld [vmem:[#allocation14 + $0x560] sm:$0xff]
    %v863 = vld [vmem:[#allocation14 + $0x568] sm:$0xff]
    %v864 = vld [vmem:[#allocation14 + $0x570] sm:$0xff]
    %v865 = vld [vmem:[#allocation14 + $0x578] sm:$0xff]
    %v866 = vld [vmem:[#allocation14 + $0x580] sm:$0xff]
    %v867 = vld [vmem:[#allocation14 + $0x588] sm:$0xff]
    %v868 = vld [vmem:[#allocation14 + $0x590] sm:$0xff]
    %v869 = vld [vmem:[#allocation14 + $0x598] sm:$0xff]
    %v870 = vld [vmem:[#allocation14 + $0x5a0] sm:$0xff]
    %v871 = vld [vmem:[#allocation14 + $0x5a8] sm:$0xff]
    %v872 = vld [vmem:[#allocation14 + $0x5b0] sm:$0xff]
    %v873 = vld [vmem:[#allocation14 + $0x5b8] sm:$0xff]
    %v874 = vld [vmem:[#allocation14 + $0x5c0] sm:$0xff]
    %v875 = vld [vmem:[#allocation14 + $0x5c8] sm:$0xff]
    %v876 = vld [vmem:[#allocation14 + $0x5d0] sm:$0xff]
    %v877 = vld [vmem:[#allocation14 + $0x5d8] sm:$0xff]
    %v878 = vld [vmem:[#allocation14 + $0x5e0] sm:$0xff]
    %v879 = vld [vmem:[#allocation14 + $0x5e8] sm:$0xff]
    %v880 = vld [vmem:[#allocation14 + $0x5f0] sm:$0xff]
    %v881 = vld [vmem:[#allocation14 + $0x5f8] sm:$0xff]
    %v882 = vld [vmem:[#allocation14 + $0x600] sm:$0xff]
    %v883 = vld [vmem:[#allocation14 + $0x608] sm:$0xff]
    %v884 = vld [vmem:[#allocation14 + $0x610] sm:$0xff]
    %v885 = vld [vmem:[#allocation14 + $0x618] sm:$0xff]
    %v886 = vld [vmem:[#allocation14 + $0x620] sm:$0xff]
    %v887 = vld [vmem:[#allocation14 + $0x628] sm:$0xff]
    %v888 = vld [vmem:[#allocation14 + $0x630] sm:$0xff]
    %v889 = vld [vmem:[#allocation14 + $0x638] sm:$0xff]
    %v890 = vld [vmem:[#allocation14 + $0x640] sm:$0xff]
    %v891 = vld [vmem:[#allocation14 + $0x648] sm:$0xff]
    %v892 = vld [vmem:[#allocation14 + $0x650] sm:$0xff]
    %v893 = vld [vmem:[#allocation14 + $0x658] sm:$0xff]
    %v894 = vld [vmem:[#allocation14 + $0x660] sm:$0xff]
    %v895 = vld [vmem:[#allocation14 + $0x668] sm:$0xff]
    %v896 = vld [vmem:[#allocation14 + $0x670] sm:$0xff]
    %v897 = vld [vmem:[#allocation14 + $0x678] sm:$0xff]
    %v898 = vld [vmem:[#allocation14 + $0x680] sm:$0xff]
    %v899 = vld [vmem:[#allocation14 + $0x688] sm:$0xff]
    %v900 = vld [vmem:[#allocation14 + $0x690] sm:$0xff]
    %v901 = vld [vmem:[#allocation14 + $0x698] sm:$0xff]
    %v902 = vld [vmem:[#allocation14 + $0x6a0] sm:$0xff]
    %v903 = vld [vmem:[#allocation14 + $0x6a8] sm:$0xff]
    %v904 = vld [vmem:[#allocation14 + $0x6b0] sm:$0xff]
    %v905 = vld [vmem:[#allocation14 + $0x6b8] sm:$0xff]
    %v906 = vld [vmem:[#allocation14 + $0x6c0] sm:$0xff]
    %v907 = vld [vmem:[#allocation14 + $0x6c8] sm:$0xff]
    %v908 = vld [vmem:[#allocation14 + $0x6d0] sm:$0xff]
    %v909 = vld [vmem:[#allocation14 + $0x6d8] sm:$0xff]
    %v910 = vld [vmem:[#allocation14 + $0x6e0] sm:$0xff]
    %v911 = vld [vmem:[#allocation14 + $0x6e8] sm:$0xff]
    %v912 = vld [vmem:[#allocation14 + $0x6f0] sm:$0xff]
    %v913 = vld [vmem:[#allocation14 + $0x6f8] sm:$0xff]
    %v914 = vld [vmem:[#allocation14 + $0x700] sm:$0xff]
    %v915 = vld [vmem:[#allocation14 + $0x708] sm:$0xff]
    %v916 = vld [vmem:[#allocation14 + $0x710] sm:$0xff]
    %v917 = vld [vmem:[#allocation14 + $0x718] sm:$0xff]
    %v918 = vld [vmem:[#allocation14 + $0x720] sm:$0xff]
    %v919 = vld [vmem:[#allocation14 + $0x728] sm:$0xff]
    %v920 = vld [vmem:[#allocation14 + $0x730] sm:$0xff]
    %v921 = vld [vmem:[#allocation14 + $0x738] sm:$0xff]
    %v922 = vld [vmem:[#allocation14 + $0x740] sm:$0xff]
    %v923 = vld [vmem:[#allocation14 + $0x748] sm:$0xff]
    %v924 = vld [vmem:[#allocation14 + $0x750] sm:$0xff]
    %v925 = vld [vmem:[#allocation14 + $0x758] sm:$0xff]
    %v926 = vld [vmem:[#allocation14 + $0x760] sm:$0xff]
    %v927 = vld [vmem:[#allocation14 + $0x768] sm:$0xff]
    %v928 = vld [vmem:[#allocation14 + $0x770] sm:$0xff]
    %v929 = vld [vmem:[#allocation14 + $0x778] sm:$0xff]
    %v930 = vld [vmem:[#allocation14 + $0x780] sm:$0xff]
    %v931 = vld [vmem:[#allocation14 + $0x788] sm:$0xff]
    %v932 = vld [vmem:[#allocation14 + $0x790] sm:$0xff]
    %v933 = vld [vmem:[#allocation14 + $0x798] sm:$0xff]
    %v934 = vld [vmem:[#allocation14 + $0x7a0] sm:$0xff]
    %v935 = vld [vmem:[#allocation14 + $0x7a8] sm:$0xff]
    %v936 = vld [vmem:[#allocation14 + $0x7b0] sm:$0xff]
    %v937 = vld [vmem:[#allocation14 + $0x7b8] sm:$0xff]
    %v938 = vld [vmem:[#allocation14 + $0x7c0] sm:$0xff]
    %v939 = vld [vmem:[#allocation14 + $0x7c8] sm:$0xff]
    %v940 = vld [vmem:[#allocation14 + $0x7d0] sm:$0xff]
    %v941 = vld [vmem:[#allocation14 + $0x7d8] sm:$0xff]
    %v942 = vld [vmem:[#allocation14 + $0x7e0] sm:$0xff]
    %v943 = vld [vmem:[#allocation14 + $0x7e8] sm:$0xff]
    %v944 = vld [vmem:[#allocation14 + $0x7f0] sm:$0xff]
    %v945 = vld [vmem:[#allocation14 + $0x7f8] sm:$0xff]
    %v946 = vld [vmem:[#allocation14 + $0x800] sm:$0xff]
    %v947 = vld [vmem:[#allocation14 + $0x808] sm:$0xff]
    %v948 = vld [vmem:[#allocation14 + $0x810] sm:$0xff]
    %v949 = vld [vmem:[#allocation14 + $0x818] sm:$0xff]
    %v950 = vld [vmem:[#allocation14 + $0x820] sm:$0xff]
    %v951 = vld [vmem:[#allocation14 + $0x828] sm:$0xff]
    %v952 = vld [vmem:[#allocation14 + $0x830] sm:$0xff]
    %v953 = vld [vmem:[#allocation14 + $0x838] sm:$0xff]
    %v954 = vld [vmem:[#allocation14 + $0x840] sm:$0xff]
    %v955 = vld [vmem:[#allocation14 + $0x848] sm:$0xff]
    %v956 = vld [vmem:[#allocation14 + $0x850] sm:$0xff]
    %v957 = vld [vmem:[#allocation14 + $0x858] sm:$0xff]
    %v958 = vld [vmem:[#allocation14 + $0x860] sm:$0xff]
    %v959 = vld [vmem:[#allocation14 + $0x868] sm:$0xff]
    %v960 = vld [vmem:[#allocation14 + $0x870] sm:$0xff]
    %v961 = vld [vmem:[#allocation14 + $0x878] sm:$0xff]
    %v962 = vld [vmem:[#allocation14 + $0x880] sm:$0xff]
    %v963 = vld [vmem:[#allocation14 + $0x888] sm:$0xff]
    %v964 = vld [vmem:[#allocation14 + $0x890] sm:$0xff]
    %v965 = vld [vmem:[#allocation14 + $0x898] sm:$0xff]
    %v966 = vld [vmem:[#allocation14 + $0x8a0] sm:$0xff]
    %v967 = vld [vmem:[#allocation14 + $0x8a8] sm:$0xff]
    %v968 = vld [vmem:[#allocation14 + $0x8b0] sm:$0xff]
    %v969 = vld [vmem:[#allocation14 + $0x8b8] sm:$0xff]
    %v970 = vld [vmem:[#allocation14 + $0x8c0] sm:$0xff]
    %v971 = vld [vmem:[#allocation14 + $0x8c8] sm:$0xff]
    %v972 = vld [vmem:[#allocation14 + $0x8d0] sm:$0xff]
    %v973 = vld [vmem:[#allocation14 + $0x8d8] sm:$0xff]
    %v974 = vld [vmem:[#allocation14 + $0x8e0] sm:$0xff]
    %v975 = vld [vmem:[#allocation14 + $0x8e8] sm:$0xff]
    %v976 = vld [vmem:[#allocation14 + $0x8f0] sm:$0xff]
    %v977 = vld [vmem:[#allocation14 + $0x8f8] sm:$0xff]
    %v978 = vld [vmem:[#allocation14 + $0x900] sm:$0xff]
    %v979 = vld [vmem:[#allocation14 + $0x908] sm:$0xff]
    %v980 = vld [vmem:[#allocation14 + $0x910] sm:$0xff]
    %v981 = vld [vmem:[#allocation14 + $0x918] sm:$0xff]
    %v982 = vld [vmem:[#allocation14 + $0x920] sm:$0xff]
    %v983 = vld [vmem:[#allocation14 + $0x928] sm:$0xff]
    %v984 = vld [vmem:[#allocation14 + $0x930] sm:$0xff]
    %v985 = vld [vmem:[#allocation14 + $0x938] sm:$0xff]
    %v986 = vld [vmem:[#allocation14 + $0x940] sm:$0xff]
    %v987 = vld [vmem:[#allocation14 + $0x948] sm:$0xff]
    %v988 = vld [vmem:[#allocation14 + $0x950] sm:$0xff]
    %v989 = vld [vmem:[#allocation14 + $0x958] sm:$0xff]
    %v990 = vld [vmem:[#allocation14 + $0x960] sm:$0xff]
    %v991 = vld [vmem:[#allocation14 + $0x968] sm:$0xff]
    %v992 = vld [vmem:[#allocation14 + $0x970] sm:$0xff]
    %v993 = vld [vmem:[#allocation14 + $0x978] sm:$0xff]
    %v994 = vld [vmem:[#allocation14 + $0x980] sm:$0xff]
    %v995 = vld [vmem:[#allocation14 + $0x988] sm:$0xff]
    %v996 = vld [vmem:[#allocation14 + $0x990] sm:$0xff]
    %v997 = vld [vmem:[#allocation14 + $0x998] sm:$0xff]
    %v998 = vld [vmem:[#allocation14 + $0x9a0] sm:$0xff]
    %v999 = vld [vmem:[#allocation14 + $0x9a8] sm:$0xff]
    %v1000 = vld [vmem:[#allocation14 + $0x9b0] sm:$0xff]
    %v1001 = vld [vmem:[#allocation14 + $0x9b8] sm:$0xff]
    %v1002 = vld [vmem:[#allocation14 + $0x9c0] sm:$0xff]
    %v1003 = vld [vmem:[#allocation14 + $0x9c8] sm:$0xff]
    %v1004 = vld [vmem:[#allocation14 + $0x9d0] sm:$0xff]
    %v1005 = vld [vmem:[#allocation14 + $0x9d8] sm:$0xff]
    %v1006 = vld [vmem:[#allocation14 + $0x9e0] sm:$0xff]
    %v1007 = vld [vmem:[#allocation14 + $0x9e8] sm:$0xff]
    %v1008 = vld [vmem:[#allocation14 + $0x9f0] sm:$0xff]
    %v1009 = vld [vmem:[#allocation14 + $0x9f8] sm:$0xff]
    %v1010 = vld [vmem:[#allocation14 + $0xa00] sm:$0xff]
    %v1011 = vld [vmem:[#allocation14 + $0xa08] sm:$0xff]
    %v1012 = vld [vmem:[#allocation14 + $0xa10] sm:$0xff]
    %v1013 = vld [vmem:[#allocation14 + $0xa18] sm:$0xff]
    %v1014 = vld [vmem:[#allocation14 + $0xa20] sm:$0xff]
    %v1015 = vld [vmem:[#allocation14 + $0xa28] sm:$0xff]
    %v1016 = vld [vmem:[#allocation14 + $0xa30] sm:$0xff]
    %v1017 = vld [vmem:[#allocation14 + $0xa38] sm:$0xff]
    %v1018 = vld [vmem:[#allocation14 + $0xa40] sm:$0xff]
    %v1019 = vld [vmem:[#allocation14 + $0xa48] sm:$0xff]
    %v1020 = vld [vmem:[#allocation14 + $0xa50] sm:$0xff]
    %v1021 = vld [vmem:[#allocation14 + $0xa58] sm:$0xff]
    %v1022 = vld [vmem:[#allocation14 + $0xa60] sm:$0xff]
    %v1023 = vld [vmem:[#allocation14 + $0xa68] sm:$0xff]
    %v1024 = vld [vmem:[#allocation14 + $0xa70] sm:$0xff]
    %v1025 = vld [vmem:[#allocation14 + $0xa78] sm:$0xff]
    %v1026 = vld [vmem:[#allocation14 + $0xa80] sm:$0xff]
    %v1027 = vld [vmem:[#allocation14 + $0xa88] sm:$0xff]
    %v1028 = vld [vmem:[#allocation14 + $0xa90] sm:$0xff]
    %v1029 = vld [vmem:[#allocation14 + $0xa98] sm:$0xff]
    %v1030 = vld [vmem:[#allocation14 + $0xaa0] sm:$0xff]
    %v1031 = vld [vmem:[#allocation14 + $0xaa8] sm:$0xff]
    %v1032 = vld [vmem:[#allocation14 + $0xab0] sm:$0xff]
    %v1033 = vld [vmem:[#allocation14 + $0xab8] sm:$0xff]
    %v1034 = vld [vmem:[#allocation14 + $0xac0] sm:$0xff]
    %v1035 = vld [vmem:[#allocation14 + $0xac8] sm:$0xff]
    %v1036 = vld [vmem:[#allocation14 + $0xad0] sm:$0xff]
    %v1037 = vld [vmem:[#allocation14 + $0xad8] sm:$0xff]
    %v1038 = vld [vmem:[#allocation14 + $0xae0] sm:$0xff]
    %v1039 = vld [vmem:[#allocation14 + $0xae8] sm:$0xff]
    %v1040 = vld [vmem:[#allocation14 + $0xaf0] sm:$0xff]
    %v1041 = vld [vmem:[#allocation14 + $0xaf8] sm:$0xff]
    %v1042 = vld [vmem:[#allocation14 + $0xb00] sm:$0xff]
    %v1043 = vld [vmem:[#allocation14 + $0xb08] sm:$0xff]
    %v1044 = vld [vmem:[#allocation14 + $0xb10] sm:$0xff]
    %v1045 = vld [vmem:[#allocation14 + $0xb18] sm:$0xff]
    %v1046 = vld [vmem:[#allocation14 + $0xb20] sm:$0xff]
    %v1047 = vld [vmem:[#allocation14 + $0xb28] sm:$0xff]
    %v1048 = vld [vmem:[#allocation14 + $0xb30] sm:$0xff]
    %v1049 = vld [vmem:[#allocation14 + $0xb38] sm:$0xff]
    %v1050 = vld [vmem:[#allocation14 + $0xb40] sm:$0xff]
    %v1051 = vld [vmem:[#allocation14 + $0xb48] sm:$0xff]
    %v1052 = vld [vmem:[#allocation14 + $0xb50] sm:$0xff]
    %v1053 = vld [vmem:[#allocation14 + $0xb58] sm:$0xff]
    %v1054 = vld [vmem:[#allocation14 + $0xb60] sm:$0xff]
    %v1055 = vld [vmem:[#allocation14 + $0xb68] sm:$0xff]
    %v1056 = vld [vmem:[#allocation14 + $0xb70] sm:$0xff]
    %v1057 = vld [vmem:[#allocation14 + $0xb78] sm:$0xff]
    %v1058 = vld [vmem:[#allocation14 + $0xb80] sm:$0xff]
    %v1059 = vld [vmem:[#allocation14 + $0xb88] sm:$0xff]
    %v1060 = vld [vmem:[#allocation14 + $0xb90] sm:$0xff]
    %v1061 = vld [vmem:[#allocation14 + $0xb98] sm:$0xff]
    %v1062 = vld [vmem:[#allocation14 + $0xba0] sm:$0xff]
    %v1063 = vld [vmem:[#allocation14 + $0xba8] sm:$0xff]
    %v1064 = vld [vmem:[#allocation14 + $0xbb0] sm:$0xff]
    %v1065 = vld [vmem:[#allocation14 + $0xbb8] sm:$0xff]
    %v1066 = vld [vmem:[#allocation14 + $0xbc0] sm:$0xff]
    %v1067 = vld [vmem:[#allocation14 + $0xbc8] sm:$0xff]
    %v1068 = vld [vmem:[#allocation14 + $0xbd0] sm:$0xff]
    %v1069 = vld [vmem:[#allocation14 + $0xbd8] sm:$0xff]
    %v1070 = vld [vmem:[#allocation14 + $0xbe0] sm:$0xff]
    %v1071 = vld [vmem:[#allocation14 + $0xbe8] sm:$0xff]
    %v1072 = vld [vmem:[#allocation14 + $0xbf0] sm:$0xff]
    %v1073 = vld [vmem:[#allocation14 + $0xbf8] sm:$0xff]
    %v1074 = vld [vmem:[#allocation14 + $0xc00] sm:$0xff]
    %v1075 = vld [vmem:[#allocation14 + $0xc08] sm:$0xff]
    %v1076 = vld [vmem:[#allocation14 + $0xc10] sm:$0xff]
    %v1077 = vld [vmem:[#allocation14 + $0xc18] sm:$0xff]
    %v1078 = vld [vmem:[#allocation14 + $0xc20] sm:$0xff]
    %v1079 = vld [vmem:[#allocation14 + $0xc28] sm:$0xff]
    %v1080 = vld [vmem:[#allocation14 + $0xc30] sm:$0xff]
    %v1081 = vld [vmem:[#allocation14 + $0xc38] sm:$0xff]
    %v1082 = vld [vmem:[#allocation14 + $0xc40] sm:$0xff]
    %v1083 = vld [vmem:[#allocation14 + $0xc48] sm:$0xff]
    %v1084 = vld [vmem:[#allocation14 + $0xc50] sm:$0xff]
    %v1085 = vld [vmem:[#allocation14 + $0xc58] sm:$0xff]
    %v1086 = vld [vmem:[#allocation14 + $0xc60] sm:$0xff]
    %v1087 = vld [vmem:[#allocation14 + $0xc68] sm:$0xff]
    %v1088 = vld [vmem:[#allocation14 + $0xc70] sm:$0xff]
    %v1089 = vld [vmem:[#allocation14 + $0xc78] sm:$0xff]
    %v1090 = vld [vmem:[#allocation14 + $0xc80] sm:$0xff]
    %v1091 = vld [vmem:[#allocation14 + $0xc88] sm:$0xff]
    %v1092 = vld [vmem:[#allocation14 + $0xc90] sm:$0xff]
    %v1093 = vld [vmem:[#allocation14 + $0xc98] sm:$0xff]
    %v1094 = vld [vmem:[#allocation14 + $0xca0] sm:$0xff]
    %v1095 = vld [vmem:[#allocation14 + $0xca8] sm:$0xff]
    %v1096 = vld [vmem:[#allocation14 + $0xcb0] sm:$0xff]
    %v1097 = vld [vmem:[#allocation14 + $0xcb8] sm:$0xff]
    %v1098 = vld [vmem:[#allocation14 + $0xcc0] sm:$0xff]
    %v1099 = vld [vmem:[#allocation14 + $0xcc8] sm:$0xff]
    %v1100 = vld [vmem:[#allocation14 + $0xcd0] sm:$0xff]
    %v1101 = vld [vmem:[#allocation14 + $0xcd8] sm:$0xff]
    %v1102 = vld [vmem:[#allocation14 + $0xce0] sm:$0xff]
    %v1103 = vld [vmem:[#allocation14 + $0xce8] sm:$0xff]
    %v1104 = vld [vmem:[#allocation14 + $0xcf0] sm:$0xff]
    %v1105 = vld [vmem:[#allocation14 + $0xcf8] sm:$0xff]
    %v1106 = vld [vmem:[#allocation14 + $0xd00] sm:$0xff]
    %v1107 = vld [vmem:[#allocation14 + $0xd08] sm:$0xff]
    %v1108 = vld [vmem:[#allocation14 + $0xd10] sm:$0xff]
    %v1109 = vld [vmem:[#allocation14 + $0xd18] sm:$0xff]
    %v1110 = vld [vmem:[#allocation14 + $0xd20] sm:$0xff]
    %v1111 = vld [vmem:[#allocation14 + $0xd28] sm:$0xff]
    %v1112 = vld [vmem:[#allocation14 + $0xd30] sm:$0xff]
    %v1113 = vld [vmem:[#allocation14 + $0xd38] sm:$0xff]
    %v1114 = vld [vmem:[#allocation14 + $0xd40] sm:$0xff]
    %v1115 = vld [vmem:[#allocation14 + $0xd48] sm:$0xff]
    %v1116 = vld [vmem:[#allocation14 + $0xd50] sm:$0xff]
    %v1117 = vld [vmem:[#allocation14 + $0xd58] sm:$0xff]
    %v1118 = vld [vmem:[#allocation14 + $0xd60] sm:$0xff]
    %v1119 = vld [vmem:[#allocation14 + $0xd68] sm:$0xff]
    %v1120 = vld [vmem:[#allocation14 + $0xd70] sm:$0xff]
    %v1121 = vld [vmem:[#allocation14 + $0xd78] sm:$0xff]
    %v1122 = vld [vmem:[#allocation14 + $0xd80] sm:$0xff]
    %v1123 = vld [vmem:[#allocation14 + $0xd88] sm:$0xff]
    %v1124 = vld [vmem:[#allocation14 + $0xd90] sm:$0xff]
    %v1125 = vld [vmem:[#allocation14 + $0xd98] sm:$0xff]
    %v1126 = vld [vmem:[#allocation14 + $0xda0] sm:$0xff]
    %v1127 = vld [vmem:[#allocation14 + $0xda8] sm:$0xff]
    %v1128 = vld [vmem:[#allocation14 + $0xdb0] sm:$0xff]
    %v1129 = vld [vmem:[#allocation14 + $0xdb8] sm:$0xff]
    %v1130 = vld [vmem:[#allocation14 + $0xdc0] sm:$0xff]
    %v1131 = vld [vmem:[#allocation14 + $0xdc8] sm:$0xff]
    %v1132 = vld [vmem:[#allocation14 + $0xdd0] sm:$0xff]
    %v1133 = vld [vmem:[#allocation14 + $0xdd8] sm:$0xff]
    %v1134 = vld [vmem:[#allocation14 + $0xde0] sm:$0xff]
    %v1135 = vld [vmem:[#allocation14 + $0xde8] sm:$0xff]
    %v1136 = vld [vmem:[#allocation14 + $0xdf0] sm:$0xff]
    %v1137 = vld [vmem:[#allocation14 + $0xdf8] sm:$0xff]
    %v1138 = vld [vmem:[#allocation14 + $0xe00] sm:$0xff]
    %v1139 = vld [vmem:[#allocation14 + $0xe08] sm:$0xff]
    %v1140 = vld [vmem:[#allocation14 + $0xe10] sm:$0xff]
    %v1141 = vld [vmem:[#allocation14 + $0xe18] sm:$0xff]
    %v1142 = vld [vmem:[#allocation14 + $0xe20] sm:$0xff]
    %v1143 = vld [vmem:[#allocation14 + $0xe28] sm:$0xff]
    %v1144 = vld [vmem:[#allocation14 + $0xe30] sm:$0xff]
    %v1145 = vld [vmem:[#allocation14 + $0xe38] sm:$0xff]
    %v1146 = vld [vmem:[#allocation14 + $0xe40] sm:$0xff]
    %v1147 = vld [vmem:[#allocation14 + $0xe48] sm:$0xff]
    %v1148 = vld [vmem:[#allocation14 + $0xe50] sm:$0xff]
    %v1149 = vld [vmem:[#allocation14 + $0xe58] sm:$0xff]
    %v1150 = vld [vmem:[#allocation14 + $0xe60] sm:$0xff]
    %v1151 = vld [vmem:[#allocation14 + $0xe68] sm:$0xff]
    %v1152 = vld [vmem:[#allocation14 + $0xe70] sm:$0xff]
    %v1153 = vld [vmem:[#allocation14 + $0xe78] sm:$0xff]
    %v1154 = vld [vmem:[#allocation14 + $0xe80] sm:$0xff]
    %v1155 = vld [vmem:[#allocation14 + $0xe88] sm:$0xff]
    %v1156 = vld [vmem:[#allocation14 + $0xe90] sm:$0xff]
    %v1157 = vld [vmem:[#allocation14 + $0xe98] sm:$0xff]
    %v1158 = vld [vmem:[#allocation14 + $0xea0] sm:$0xff]
    %v1159 = vld [vmem:[#allocation14 + $0xea8] sm:$0xff]
    %v1160 = vld [vmem:[#allocation14 + $0xeb0] sm:$0xff]
    %v1161 = vld [vmem:[#allocation14 + $0xeb8] sm:$0xff]
    %v1162 = vld [vmem:[#allocation14 + $0xec0] sm:$0xff]
    %v1163 = vld [vmem:[#allocation14 + $0xec8] sm:$0xff]
    %v1164 = vld [vmem:[#allocation14 + $0xed0] sm:$0xff]
    %v1165 = vld [vmem:[#allocation14 + $0xed8] sm:$0xff]
    %v1166 = vld [vmem:[#allocation14 + $0xee0] sm:$0xff]
    %v1167 = vld [vmem:[#allocation14 + $0xee8] sm:$0xff]
    %v1168 = vld [vmem:[#allocation14 + $0xef0] sm:$0xff]
    %v1169 = vld [vmem:[#allocation14 + $0xef8] sm:$0xff]
    %v1170 = vld [vmem:[#allocation14 + $0xf00] sm:$0xff]
    %v1171 = vld [vmem:[#allocation14 + $0xf08] sm:$0xff]
    %v1172 = vld [vmem:[#allocation14 + $0xf10] sm:$0xff]
    %v1173 = vld [vmem:[#allocation14 + $0xf18] sm:$0xff]
    %v1174 = vld [vmem:[#allocation14 + $0xf20] sm:$0xff]
    %v1175 = vld [vmem:[#allocation14 + $0xf28] sm:$0xff]
    %v1176 = vld [vmem:[#allocation14 + $0xf30] sm:$0xff]
    %v1177 = vld [vmem:[#allocation14 + $0xf38] sm:$0xff]
    %v1178 = vld [vmem:[#allocation14 + $0xf40] sm:$0xff]
    %v1179 = vld [vmem:[#allocation14 + $0xf48] sm:$0xff]
    %v1180 = vld [vmem:[#allocation14 + $0xf50] sm:$0xff]
    %v1181 = vld [vmem:[#allocation14 + $0xf58] sm:$0xff]
    %v1182 = vld [vmem:[#allocation14 + $0xf60] sm:$0xff]
    %v1183 = vld [vmem:[#allocation14 + $0xf68] sm:$0xff]
    %v1184 = vld [vmem:[#allocation14 + $0xf70] sm:$0xff]
    %v1185 = vld [vmem:[#allocation14 + $0xf78] sm:$0xff]
    %v1186 = vld [vmem:[#allocation14 + $0xf80] sm:$0xff]
    %v1187 = vld [vmem:[#allocation14 + $0xf88] sm:$0xff]
    %v1188 = vld [vmem:[#allocation14 + $0xf90] sm:$0xff]
    %v1189 = vld [vmem:[#allocation14 + $0xf98] sm:$0xff]
    %v1190 = vld [vmem:[#allocation14 + $0xfa0] sm:$0xff]
    %v1191 = vld [vmem:[#allocation14 + $0xfa8] sm:$0xff]
    %v1192 = vld [vmem:[#allocation14 + $0xfb0] sm:$0xff]
    %v1193 = vld [vmem:[#allocation14 + $0xfb8] sm:$0xff]
    %v1194 = vld [vmem:[#allocation14 + $0xfc0] sm:$0xff]
    %v1195 = vld [vmem:[#allocation14 + $0xfc8] sm:$0xff]
    %v1196 = vld [vmem:[#allocation14 + $0xfd0] sm:$0xff]
    %v1197 = vld [vmem:[#allocation14 + $0xfd8] sm:$0xff]
    %v1198 = vld [vmem:[#allocation14 + $0xfe0] sm:$0xff]
    %v1199 = vld [vmem:[#allocation14 + $0xfe8] sm:$0xff]
    %v1200 = vld [vmem:[#allocation14 + $0xff0] sm:$0xff]
    %v1201 = vld [vmem:[#allocation14 + $0xff8] sm:$0xff]
    %v1202 = vld [vmem:[#allocation16] sm:$0xff]
    %v1204 = vlaneseq
    %v1205 = vshrl.u32 %v1204, 7
    %v1206 = vsub.s32 0, %v1205
    %v1207 = vrot.slane %v1202, %v1206
    %v1208 = vlaneseq
    %v1209 = vshrl.u32 %v1208, 7
    %v1210 = vsub.s32 1, %v1209
    %v1211 = vrot.slane %v1202, %v1210
    %v1212 = vlaneseq
    %v1213 = vshrl.u32 %v1212, 7
    %v1214 = vsub.s32 2, %v1213
    %v1215 = vrot.slane %v1202, %v1214
    %v1216 = vlaneseq
    %v1217 = vshrl.u32 %v1216, 7
    %v1218 = vsub.s32 3, %v1217
    %v1219 = vrot.slane %v1202, %v1218
    %v1220 = vlaneseq
    %v1221 = vshrl.u32 %v1220, 7
    %v1222 = vsub.s32 4, %v1221
    %v1223 = vrot.slane %v1202, %v1222
    %v1224 = vlaneseq
    %v1225 = vshrl.u32 %v1224, 7
    %v1226 = vsub.s32 5, %v1225
    %v1227 = vrot.slane %v1202, %v1226
    %v1228 = vlaneseq
    %v1229 = vshrl.u32 %v1228, 7
    %v1230 = vsub.s32 6, %v1229
    %v1231 = vrot.slane %v1202, %v1230
    %v1232 = vlaneseq
    %v1233 = vshrl.u32 %v1232, 7
    %v1234 = vsub.s32 7, %v1233
    %v1235 = vrot.slane %v1202, %v1234
    %1244 = vmatprep.subr.mxu0 %v691
    %1245 = vmatpush1.msra.mxu0 %v690
    %1246 = vmatprep.subr.mxu0 %v699
    %1247 = vmatpush1.msra.mxu0 %v698
    %1248 = vmatprep.subr.mxu0 %v707
    %1249 = vmatpush1.msra.mxu0 %v706
    %1250 = vmatprep.subr.mxu0 %v715
    %1251 = vmatpush1.msra.mxu0 %v714
    %1252 = vmatprep.subr.mxu0 %v723
    %1253 = vmatpush1.msra.mxu0 %v722
    %1254 = vmatprep.subr.mxu0 %v731
    %1255 = vmatpush1.msra.mxu0 %v730
    %1256 = vmatprep.subr.mxu0 %v739
    %1257 = vmatpush1.msra.mxu0 %v738
    %1258 = vmatprep.subr.mxu0 %v747
    %1259 = vmatpush1.msra.mxu0 %v746
    %1260 = vmatprep.subr.mxu0 %v755
    %1261 = vmatpush1.msra.mxu0 %v754
    %1262 = vmatprep.subr.mxu0 %v763
    %1263 = vmatpush1.msra.mxu0 %v762
    %1264 = vmatprep.subr.mxu0 %v771
    %1265 = vmatpush1.msra.mxu0 %v770
    %1266 = vmatprep.subr.mxu0 %v779
    %1267 = vmatpush1.msra.mxu0 %v778
    %1268 = vmatprep.subr.mxu0 %v787
    %1269 = vmatpush1.msra.mxu0 %v786
    %1270 = vmatprep.subr.mxu0 %v795
    %1271 = vmatpush1.msra.mxu0 %v794
    %1272 = vmatprep.subr.mxu0 %v803
    %1273 = vmatpush1.msra.mxu0 %v802
    %1274 = vmatprep.subr.mxu0 %v811
    %1275 = vmatpush1.msra.mxu0 %v810
    %1276 = vmatprep.subr.mxu0 %v819
    %1277 = vmatpush1.msra.mxu0 %v818
    %1278 = vmatprep.subr.mxu0 %v827
    %1279 = vmatpush1.msra.mxu0 %v826
    %1280 = vmatprep.subr.mxu0 %v835
    %1281 = vmatpush1.msra.mxu0 %v834
    %1282 = vmatprep.subr.mxu0 %v843
    %1283 = vmatpush1.msra.mxu0 %v842
    %1284 = vmatprep.subr.mxu0 %v851
    %1285 = vmatpush1.msra.mxu0 %v850
    %1286 = vmatprep.subr.mxu0 %v859
    %1287 = vmatpush1.msra.mxu0 %v858
    %1288 = vmatprep.subr.mxu0 %v867
    %1289 = vmatpush1.msra.mxu0 %v866
    %1290 = vmatprep.subr.mxu0 %v875
    %1291 = vmatpush1.msra.mxu0 %v874
    %1292 = vmatprep.subr.mxu0 %v883
    %1293 = vmatpush1.msra.mxu0 %v882
    %1294 = vmatprep.subr.mxu0 %v891
    %1295 = vmatpush1.msra.mxu0 %v890
    %1296 = vmatprep.subr.mxu0 %v899
    %1297 = vmatpush1.msra.mxu0 %v898
    %1298 = vmatprep.subr.mxu0 %v907
    %1299 = vmatpush1.msra.mxu0 %v906
    %1300 = vmatprep.subr.mxu0 %v915
    %1301 = vmatpush1.msra.mxu0 %v914
    %1302 = vmatprep.subr.mxu0 %v923
    %1303 = vmatpush1.msra.mxu0 %v922
    %1304 = vmatprep.subr.mxu0 %v931
    %1305 = vmatpush1.msra.mxu0 %v930
    %1306 = vmatprep.subr.mxu0 %v939
    %1307 = vmatpush1.msra.mxu0 %v938
    %1308 = vmatprep.mubr.f32.mxu0 %v687
    %1309 = vmatmul.mubr.f32.gmra.mrb[0].mxu0 %v686
    %v1310 = vpop.f32.mrb[0].mxu0
    %v1311 = vadd.f32 %v1207, %v1310
    %v1312 = vpop.f32.mrb[0].mxu0
    %v1313 = vadd.f32 %v1211, %v1312
    %1314 = vdwg.mxu0
    %1315 = vmatprep.subr.mxu0 %v947
    %1316 = vmatpush1.msra.mxu0 %v946
    %1317 = vmatprep.subr.mxu0 %v955
    %1318 = vmatpush1.msra.mxu0 %v954
    %1319 = vmatprep.subr.mxu0 %v963
    %1320 = vmatpush1.msra.mxu0 %v962
    %1321 = vmatprep.subr.mxu0 %v971
    %1322 = vmatpush1.msra.mxu0 %v970
    %1323 = vmatprep.subr.mxu0 %v979
    %1324 = vmatpush1.msra.mxu0 %v978
    %1325 = vmatprep.subr.mxu0 %v987
    %1326 = vmatpush1.msra.mxu0 %v986
    %1327 = vmatprep.subr.mxu0 %v995
    %1328 = vmatpush1.msra.mxu0 %v994
    %1329 = vmatprep.subr.mxu0 %v1003
    %1330 = vmatpush1.msra.mxu0 %v1002
    %1331 = vmatprep.subr.mxu0 %v1011
    %1332 = vmatpush1.msra.mxu0 %v1010
    %1333 = vmatprep.subr.mxu0 %v1019
    %1334 = vmatpush1.msra.mxu0 %v1018
    %1335 = vmatprep.subr.mxu0 %v1027
    %1336 = vmatpush1.msra.mxu0 %v1026
    %1337 = vmatprep.subr.mxu0 %v1035
    %1338 = vmatpush1.msra.mxu0 %v1034
    %1339 = vmatprep.subr.mxu0 %v1043
    %1340 = vmatpush1.msra.mxu0 %v1042
    %1341 = vmatprep.subr.mxu0 %v1051
    %1342 = vmatpush1.msra.mxu0 %v1050
    %1343 = vmatprep.subr.mxu0 %v1059
    %1344 = vmatpush1.msra.mxu0 %v1058
    %1345 = vmatprep.subr.mxu0 %v1067
    %1346 = vmatpush1.msra.mxu0 %v1066
    %1347 = vmatprep.subr.mxu0 %v1075
    %1348 = vmatpush1.msra.mxu0 %v1074
    %1349 = vmatprep.subr.mxu0 %v1083
    %1350 = vmatpush1.msra.mxu0 %v1082
    %1351 = vmatprep.subr.mxu0 %v1091
    %1352 = vmatpush1.msra.mxu0 %v1090
    %1353 = vmatprep.subr.mxu0 %v1099
    %1354 = vmatpush1.msra.mxu0 %v1098
    %1355 = vmatprep.subr.mxu0 %v1107
    %1356 = vmatpush1.msra.mxu0 %v1106
    %1357 = vmatprep.subr.mxu0 %v1115
    %1358 = vmatpush1.msra.mxu0 %v1114
    %1359 = vmatprep.subr.mxu0 %v1123
    %1360 = vmatpush1.msra.mxu0 %v1122
    %1361 = vmatprep.subr.mxu0 %v1131
    %1362 = vmatpush1.msra.mxu0 %v1130
    %1363 = vmatprep.subr.mxu0 %v1139
    %1364 = vmatpush1.msra.mxu0 %v1138
    %1365 = vmatprep.subr.mxu0 %v1147
    %1366 = vmatpush1.msra.mxu0 %v1146
    %1367 = vmatprep.subr.mxu0 %v1155
    %1368 = vmatpush1.msra.mxu0 %v1154
    %1369 = vmatprep.subr.mxu0 %v1163
    %1370 = vmatpush1.msra.mxu0 %v1162
    %1371 = vmatprep.subr.mxu0 %v1171
    %1372 = vmatpush1.msra.mxu0 %v1170
    %1373 = vmatprep.subr.mxu0 %v1179
    %1374 = vmatpush1.msra.mxu0 %v1178
    %1375 = vmatprep.subr.mxu0 %v1187
    %1376 = vmatpush1.msra.mxu0 %v1186
    %1377 = vmatprep.subr.mxu0 %v1195
    %1378 = vmatpush1.msra.mxu0 %v1194
    %1379 = vmatprep.mubr.f32.mxu0 %v689
    %1380 = vmatmul.mubr.f32.gmra.mrb[0].mxu0 %v688
    %v1381 = vpop.f32.mrb[0].mxu0
    %v1382 = vadd.f32 %v1311, %v1381
    %v1383 = vpop.f32.mrb[0].mxu0
    %v1384 = vadd.f32 %v1313, %v1383
    %1385 = vdwg.mxu0
    %1386 = vmatprep.subr.mxu0 %v693
    %1387 = vmatpush1.msra.mxu0 %v692
    %1388 = vmatprep.subr.mxu0 %v701
    %1389 = vmatpush1.msra.mxu0 %v700
    %1390 = vmatprep.subr.mxu0 %v709
    %1391 = vmatpush1.msra.mxu0 %v708
    %1392 = vmatprep.subr.mxu0 %v717
    %1393 = vmatpush1.msra.mxu0 %v716
    %1394 = vmatprep.subr.mxu0 %v725
    %1395 = vmatpush1.msra.mxu0 %v724
    %1396 = vmatprep.subr.mxu0 %v733
    %1397 = vmatpush1.msra.mxu0 %v732
    %1398 = vmatprep.subr.mxu0 %v741
    %1399 = vmatpush1.msra.mxu0 %v740
    %1400 = vmatprep.subr.mxu0 %v749
    %1401 = vmatpush1.msra.mxu0 %v748
    %1402 = vmatprep.subr.mxu0 %v757
    %1403 = vmatpush1.msra.mxu0 %v756
    %1404 = vmatprep.subr.mxu0 %v765
    %1405 = vmatpush1.msra.mxu0 %v764
    %1406 = vmatprep.subr.mxu0 %v773
    %1407 = vmatpush1.msra.mxu0 %v772
    %1408 = vmatprep.subr.mxu0 %v781
    %1409 = vmatpush1.msra.mxu0 %v780
    %1410 = vmatprep.subr.mxu0 %v789
    %1411 = vmatpush1.msra.mxu0 %v788
    %1412 = vmatprep.subr.mxu0 %v797
    %1413 = vmatpush1.msra.mxu0 %v796
    %1414 = vmatprep.subr.mxu0 %v805
    %1415 = vmatpush1.msra.mxu0 %v804
    %1416 = vmatprep.subr.mxu0 %v813
    %1417 = vmatpush1.msra.mxu0 %v812
    %1418 = vmatprep.subr.mxu0 %v821
    %1419 = vmatpush1.msra.mxu0 %v820
    %1420 = vmatprep.subr.mxu0 %v829
    %1421 = vmatpush1.msra.mxu0 %v828
    %1422 = vmatprep.subr.mxu0 %v837
    %1423 = vmatpush1.msra.mxu0 %v836
    %1424 = vmatprep.subr.mxu0 %v845
    %1425 = vmatpush1.msra.mxu0 %v844
    %1426 = vmatprep.subr.mxu0 %v853
    %1427 = vmatpush1.msra.mxu0 %v852
    %1428 = vmatprep.subr.mxu0 %v861
    %1429 = vmatpush1.msra.mxu0 %v860
    %1430 = vmatprep.subr.mxu0 %v869
    %1431 = vmatpush1.msra.mxu0 %v868
    %1432 = vmatprep.subr.mxu0 %v877
    %1433 = vmatpush1.msra.mxu0 %v876
    %1434 = vmatprep.subr.mxu0 %v885
    %1435 = vmatpush1.msra.mxu0 %v884
    %1436 = vmatprep.subr.mxu0 %v893
    %1437 = vmatpush1.msra.mxu0 %v892
    %1438 = vmatprep.subr.mxu0 %v901
    %1439 = vmatpush1.msra.mxu0 %v900
    %1440 = vmatprep.subr.mxu0 %v909
    %1441 = vmatpush1.msra.mxu0 %v908
    %1442 = vmatprep.subr.mxu0 %v917
    %1443 = vmatpush1.msra.mxu0 %v916
    %1444 = vmatprep.subr.mxu0 %v925
    %1445 = vmatpush1.msra.mxu0 %v924
    %1446 = vmatprep.subr.mxu0 %v933
    %1447 = vmatpush1.msra.mxu0 %v932
    %1448 = vmatprep.subr.mxu0 %v941
    %1449 = vmatpush1.msra.mxu0 %v940
    %1450 = vmatprep.mubr.f32.mxu0 %v687
    %1451 = vmatmul.mubr.f32.gmra.mrb[0].mxu0 %v686
    %v1452 = vpop.f32.mrb[0].mxu0
    %v1453 = vadd.f32 %v1215, %v1452
    %v1454 = vpop.f32.mrb[0].mxu0
    %v1455 = vadd.f32 %v1219, %v1454
    %1456 = vdwg.mxu0
    %1457 = vmatprep.subr.mxu0 %v949
    %1458 = vmatpush1.msra.mxu0 %v948
    %1459 = vmatprep.subr.mxu0 %v957
    %1460 = vmatpush1.msra.mxu0 %v956
    %1461 = vmatprep.subr.mxu0 %v965
    %1462 = vmatpush1.msra.mxu0 %v964
    %1463 = vmatprep.subr.mxu0 %v973
    %1464 = vmatpush1.msra.mxu0 %v972
    %1465 = vmatprep.subr.mxu0 %v981
    %1466 = vmatpush1.msra.mxu0 %v980
    %1467 = vmatprep.subr.mxu0 %v989
    %1468 = vmatpush1.msra.mxu0 %v988
    %1469 = vmatprep.subr.mxu0 %v997
    %1470 = vmatpush1.msra.mxu0 %v996
    %1471 = vmatprep.subr.mxu0 %v1005
    %1472 = vmatpush1.msra.mxu0 %v1004
    %1473 = vmatprep.subr.mxu0 %v1013
    %1474 = vmatpush1.msra.mxu0 %v1012
    %1475 = vmatprep.subr.mxu0 %v1021
    %1476 = vmatpush1.msra.mxu0 %v1020
    %1477 = vmatprep.subr.mxu0 %v1029
    %1478 = vmatpush1.msra.mxu0 %v1028
    %1479 = vmatprep.subr.mxu0 %v1037
    %1480 = vmatpush1.msra.mxu0 %v1036
    %1481 = vmatprep.subr.mxu0 %v1045
    %1482 = vmatpush1.msra.mxu0 %v1044
    %1483 = vmatprep.subr.mxu0 %v1053
    %1484 = vmatpush1.msra.mxu0 %v1052
    %1485 = vmatprep.subr.mxu0 %v1061
    %1486 = vmatpush1.msra.mxu0 %v1060
    %1487 = vmatprep.subr.mxu0 %v1069
    %1488 = vmatpush1.msra.mxu0 %v1068
    %1489 = vmatprep.subr.mxu0 %v1077
    %1490 = vmatpush1.msra.mxu0 %v1076
    %1491 = vmatprep.subr.mxu0 %v1085
    %1492 = vmatpush1.msra.mxu0 %v1084
    %1493 = vmatprep.subr.mxu0 %v1093
    %1494 = vmatpush1.msra.mxu0 %v1092
    %1495 = vmatprep.subr.mxu0 %v1101
    %1496 = vmatpush1.msra.mxu0 %v1100
    %1497 = vmatprep.subr.mxu0 %v1109
    %1498 = vmatpush1.msra.mxu0 %v1108
    %1499 = vmatprep.subr.mxu0 %v1117
    %1500 = vmatpush1.msra.mxu0 %v1116
    %1501 = vmatprep.subr.mxu0 %v1125
    %1502 = vmatpush1.msra.mxu0 %v1124
    %1503 = vmatprep.subr.mxu0 %v1133
    %1504 = vmatpush1.msra.mxu0 %v1132
    %1505 = vmatprep.subr.mxu0 %v1141
    %1506 = vmatpush1.msra.mxu0 %v1140
    %1507 = vmatprep.subr.mxu0 %v1149
    %1508 = vmatpush1.msra.mxu0 %v1148
    %1509 = vmatprep.subr.mxu0 %v1157
    %1510 = vmatpush1.msra.mxu0 %v1156
    %1511 = vmatprep.subr.mxu0 %v1165
    %1512 = vmatpush1.msra.mxu0 %v1164
    %1513 = vmatprep.subr.mxu0 %v1173
    %1514 = vmatpush1.msra.mxu0 %v1172
    %1515 = vmatprep.subr.mxu0 %v1181
    %1516 = vmatpush1.msra.mxu0 %v1180
    %1517 = vmatprep.subr.mxu0 %v1189
    %1518 = vmatpush1.msra.mxu0 %v1188
    %1519 = vmatprep.subr.mxu0 %v1197
    %1520 = vmatpush1.msra.mxu0 %v1196
    %1521 = vmatprep.mubr.f32.mxu0 %v689
    %1522 = vmatmul.mubr.f32.gmra.mrb[0].mxu0 %v688
    %v1523 = vpop.f32.mrb[0].mxu0
    %v1524 = vadd.f32 %v1453, %v1523
    %v1525 = vpop.f32.mrb[0].mxu0
    %v1526 = vadd.f32 %v1455, %v1525
    %1527 = vdwg.mxu0
    %1528 = vmatprep.subr.mxu0 %v695
    %1529 = vmatpush1.msra.mxu0 %v694
    %1530 = vmatprep.subr.mxu0 %v703
    %1531 = vmatpush1.msra.mxu0 %v702
    %1532 = vmatprep.subr.mxu0 %v711
    %1533 = vmatpush1.msra.mxu0 %v710
    %1534 = vmatprep.subr.mxu0 %v719
    %1535 = vmatpush1.msra.mxu0 %v718
    %1536 = vmatprep.subr.mxu0 %v727
    %1537 = vmatpush1.msra.mxu0 %v726
    %1538 = vmatprep.subr.mxu0 %v735
    %1539 = vmatpush1.msra.mxu0 %v734
    %1540 = vmatprep.subr.mxu0 %v743
    %1541 = vmatpush1.msra.mxu0 %v742
    %1542 = vmatprep.subr.mxu0 %v751
    %1543 = vmatpush1.msra.mxu0 %v750
    %1544 = vmatprep.subr.mxu0 %v759
    %1545 = vmatpush1.msra.mxu0 %v758
    %1546 = vmatprep.subr.mxu0 %v767
    %1547 = vmatpush1.msra.mxu0 %v766
    %1548 = vmatprep.subr.mxu0 %v775
    %1549 = vmatpush1.msra.mxu0 %v774
    %1550 = vmatprep.subr.mxu0 %v783
    %1551 = vmatpush1.msra.mxu0 %v782
    %1552 = vmatprep.subr.mxu0 %v791
    %1553 = vmatpush1.msra.mxu0 %v790
    %1554 = vmatprep.subr.mxu0 %v799
    %1555 = vmatpush1.msra.mxu0 %v798
    %1556 = vmatprep.subr.mxu0 %v807
    %1557 = vmatpush1.msra.mxu0 %v806
    %1558 = vmatprep.subr.mxu0 %v815
    %1559 = vmatpush1.msra.mxu0 %v814
    %1560 = vmatprep.subr.mxu0 %v823
    %1561 = vmatpush1.msra.mxu0 %v822
    %1562 = vmatprep.subr.mxu0 %v831
    %1563 = vmatpush1.msra.mxu0 %v830
    %1564 = vmatprep.subr.mxu0 %v839
    %1565 = vmatpush1.msra.mxu0 %v838
    %1566 = vmatprep.subr.mxu0 %v847
    %1567 = vmatpush1.msra.mxu0 %v846
    %1568 = vmatprep.subr.mxu0 %v855
    %1569 = vmatpush1.msra.mxu0 %v854
    %1570 = vmatprep.subr.mxu0 %v863
    %1571 = vmatpush1.msra.mxu0 %v862
    %1572 = vmatprep.subr.mxu0 %v871
    %1573 = vmatpush1.msra.mxu0 %v870
    %1574 = vmatprep.subr.mxu0 %v879
    %1575 = vmatpush1.msra.mxu0 %v878
    %1576 = vmatprep.subr.mxu0 %v887
    %1577 = vmatpush1.msra.mxu0 %v886
    %1578 = vmatprep.subr.mxu0 %v895
    %1579 = vmatpush1.msra.mxu0 %v894
    %1580 = vmatprep.subr.mxu0 %v903
    %1581 = vmatpush1.msra.mxu0 %v902
    %1582 = vmatprep.subr.mxu0 %v911
    %1583 = vmatpush1.msra.mxu0 %v910
    %1584 = vmatprep.subr.mxu0 %v919
    %1585 = vmatpush1.msra.mxu0 %v918
    %1586 = vmatprep.subr.mxu0 %v927
    %1587 = vmatpush1.msra.mxu0 %v926
    %1588 = vmatprep.subr.mxu0 %v935
    %1589 = vmatpush1.msra.mxu0 %v934
    %1590 = vmatprep.subr.mxu0 %v943
    %1591 = vmatpush1.msra.mxu0 %v942
    %1592 = vmatprep.mubr.f32.mxu0 %v687
    %1593 = vmatmul.mubr.f32.gmra.mrb[0].mxu0 %v686
    %v1594 = vpop.f32.mrb[0].mxu0
    %v1595 = vadd.f32 %v1223, %v1594
    %v1596 = vpop.f32.mrb[0].mxu0
    %v1597 = vadd.f32 %v1227, %v1596
    %1598 = vdwg.mxu0
    %1599 = vmatprep.subr.mxu0 %v951
    %1600 = vmatpush1.msra.mxu0 %v950
    %1601 = vmatprep.subr.mxu0 %v959
    %1602 = vmatpush1.msra.mxu0 %v958
    %1603 = vmatprep.subr.mxu0 %v967
    %1604 = vmatpush1.msra.mxu0 %v966
    %1605 = vmatprep.subr.mxu0 %v975
    %1606 = vmatpush1.msra.mxu0 %v974
    %1607 = vmatprep.subr.mxu0 %v983
    %1608 = vmatpush1.msra.mxu0 %v982
    %1609 = vmatprep.subr.mxu0 %v991
    %1610 = vmatpush1.msra.mxu0 %v990
    %1611 = vmatprep.subr.mxu0 %v999
    %1612 = vmatpush1.msra.mxu0 %v998
    %1613 = vmatprep.subr.mxu0 %v1007
    %1614 = vmatpush1.msra.mxu0 %v1006
    %1615 = vmatprep.subr.mxu0 %v1015
    %1616 = vmatpush1.msra.mxu0 %v1014
    %1617 = vmatprep.subr.mxu0 %v1023
    %1618 = vmatpush1.msra.mxu0 %v1022
    %1619 = vmatprep.subr.mxu0 %v1031
    %1620 = vmatpush1.msra.mxu0 %v1030
    %1621 = vmatprep.subr.mxu0 %v1039
    %1622 = vmatpush1.msra.mxu0 %v1038
    %1623 = vmatprep.subr.mxu0 %v1047
    %1624 = vmatpush1.msra.mxu0 %v1046
    %1625 = vmatprep.subr.mxu0 %v1055
    %1626 = vmatpush1.msra.mxu0 %v1054
    %1627 = vmatprep.subr.mxu0 %v1063
    %1628 = vmatpush1.msra.mxu0 %v1062
    %1629 = vmatprep.subr.mxu0 %v1071
    %1630 = vmatpush1.msra.mxu0 %v1070
    %1631 = vmatprep.subr.mxu0 %v1079
    %1632 = vmatpush1.msra.mxu0 %v1078
    %1633 = vmatprep.subr.mxu0 %v1087
    %1634 = vmatpush1.msra.mxu0 %v1086
    %1635 = vmatprep.subr.mxu0 %v1095
    %1636 = vmatpush1.msra.mxu0 %v1094
    %1637 = vmatprep.subr.mxu0 %v1103
    %1638 = vmatpush1.msra.mxu0 %v1102
    %1639 = vmatprep.subr.mxu0 %v1111
    %1640 = vmatpush1.msra.mxu0 %v1110
    %1641 = vmatprep.subr.mxu0 %v1119
    %1642 = vmatpush1.msra.mxu0 %v1118
    %1643 = vmatprep.subr.mxu0 %v1127
    %1644 = vmatpush1.msra.mxu0 %v1126
    %1645 = vmatprep.subr.mxu0 %v1135
    %1646 = vmatpush1.msra.mxu0 %v1134
    %1647 = vmatprep.subr.mxu0 %v1143
    %1648 = vmatpush1.msra.mxu0 %v1142
    %1649 = vmatprep.subr.mxu0 %v1151
    %1650 = vmatpush1.msra.mxu0 %v1150
    %1651 = vmatprep.subr.mxu0 %v1159
    %1652 = vmatpush1.msra.mxu0 %v1158
    %1653 = vmatprep.subr.mxu0 %v1167
    %1654 = vmatpush1.msra.mxu0 %v1166
    %1655 = vmatprep.subr.mxu0 %v1175
    %1656 = vmatpush1.msra.mxu0 %v1174
    %1657 = vmatprep.subr.mxu0 %v1183
    %1658 = vmatpush1.msra.mxu0 %v1182
    %1659 = vmatprep.subr.mxu0 %v1191
    %1660 = vmatpush1.msra.mxu0 %v1190
    %1661 = vmatprep.subr.mxu0 %v1199
    %1662 = vmatpush1.msra.mxu0 %v1198
    %1663 = vmatprep.mubr.f32.mxu0 %v689
    %1664 = vmatmul.mubr.f32.gmra.mrb[0].mxu0 %v688
    %v1665 = vpop.f32.mrb[0].mxu0
    %v1666 = vadd.f32 %v1595, %v1665
    %v1667 = vpop.f32.mrb[0].mxu0
    %v1668 = vadd.f32 %v1597, %v1667
    %1669 = vdwg.mxu0
    %1670 = vmatprep.subr.mxu0 %v697
    %1671 = vmatpush1.msra.mxu0 %v696
    %1672 = vmatprep.subr.mxu0 %v705
    %1673 = vmatpush1.msra.mxu0 %v704
    %1674 = vmatprep.subr.mxu0 %v713
    %1675 = vmatpush1.msra.mxu0 %v712
    %1676 = vmatprep.subr.mxu0 %v721
    %1677 = vmatpush1.msra.mxu0 %v720
    %1678 = vmatprep.subr.mxu0 %v729
    %1679 = vmatpush1.msra.mxu0 %v728
    %1680 = vmatprep.subr.mxu0 %v737
    %1681 = vmatpush1.msra.mxu0 %v736
    %1682 = vmatprep.subr.mxu0 %v745
    %1683 = vmatpush1.msra.mxu0 %v744
    %1684 = vmatprep.subr.mxu0 %v753
    %1685 = vmatpush1.msra.mxu0 %v752
    %1686 = vmatprep.subr.mxu0 %v761
    %1687 = vmatpush1.msra.mxu0 %v760
    %1688 = vmatprep.subr.mxu0 %v769
    %1689 = vmatpush1.msra.mxu0 %v768
    %1690 = vmatprep.subr.mxu0 %v777
    %1691 = vmatpush1.msra.mxu0 %v776
    %1692 = vmatprep.subr.mxu0 %v785
    %1693 = vmatpush1.msra.mxu0 %v784
    %1694 = vmatprep.subr.mxu0 %v793
    %1695 = vmatpush1.msra.mxu0 %v792
    %1696 = vmatprep.subr.mxu0 %v801
    %1697 = vmatpush1.msra.mxu0 %v800
    %1698 = vmatprep.subr.mxu0 %v809
    %1699 = vmatpush1.msra.mxu0 %v808
    %1700 = vmatprep.subr.mxu0 %v817
    %1701 = vmatpush1.msra.mxu0 %v816
    %1702 = vmatprep.subr.mxu0 %v825
    %1703 = vmatpush1.msra.mxu0 %v824
    %1704 = vmatprep.subr.mxu0 %v833
    %1705 = vmatpush1.msra.mxu0 %v832
    %1706 = vmatprep.subr.mxu0 %v841
    %1707 = vmatpush1.msra.mxu0 %v840
    %1708 = vmatprep.subr.mxu0 %v849
    %1709 = vmatpush1.msra.mxu0 %v848
    %1710 = vmatprep.subr.mxu0 %v857
    %1711 = vmatpush1.msra.mxu0 %v856
    %1712 = vmatprep.subr.mxu0 %v865
    %1713 = vmatpush1.msra.mxu0 %v864
    %1714 = vmatprep.subr.mxu0 %v873
    %1715 = vmatpush1.msra.mxu0 %v872
    %1716 = vmatprep.subr.mxu0 %v881
    %1717 = vmatpush1.msra.mxu0 %v880
    %1718 = vmatprep.subr.mxu0 %v889
    %1719 = vmatpush1.msra.mxu0 %v888
    %1720 = vmatprep.subr.mxu0 %v897
    %1721 = vmatpush1.msra.mxu0 %v896
    %1722 = vmatprep.subr.mxu0 %v905
    %1723 = vmatpush1.msra.mxu0 %v904
    %1724 = vmatprep.subr.mxu0 %v913
    %1725 = vmatpush1.msra.mxu0 %v912
    %1726 = vmatprep.subr.mxu0 %v921
    %1727 = vmatpush1.msra.mxu0 %v920
    %1728 = vmatprep.subr.mxu0 %v929
    %1729 = vmatpush1.msra.mxu0 %v928
    %1730 = vmatprep.subr.mxu0 %v937
    %1731 = vmatpush1.msra.mxu0 %v936
    %1732 = vmatprep.subr.mxu0 %v945
    %1733 = vmatpush1.msra.mxu0 %v944
    %1734 = vmatprep.mubr.f32.mxu0 %v687
    %1735 = vmatmul.mubr.f32.gmra.mrb[0].mxu0 %v686
    %v1736 = vpop.f32.mrb[0].mxu0
    %v1737 = vadd.f32 %v1231, %v1736
    %v1738 = vpop.f32.mrb[0].mxu0
    %v1739 = vadd.f32 %v1235, %v1738
    %1740 = vdwg.mxu0
    %1741 = vmatprep.subr.mxu0 %v953
    %1742 = vmatpush1.msra.mxu0 %v952
    %1743 = vmatprep.subr.mxu0 %v961
    %1744 = vmatpush1.msra.mxu0 %v960
    %1745 = vmatprep.subr.mxu0 %v969
    %1746 = vmatpush1.msra.mxu0 %v968
    %1747 = vmatprep.subr.mxu0 %v977
    %1748 = vmatpush1.msra.mxu0 %v976
    %1749 = vmatprep.subr.mxu0 %v985
    %1750 = vmatpush1.msra.mxu0 %v984
    %1751 = vmatprep.subr.mxu0 %v993
    %1752 = vmatpush1.msra.mxu0 %v992
    %1753 = vmatprep.subr.mxu0 %v1001
    %1754 = vmatpush1.msra.mxu0 %v1000
    %1755 = vmatprep.subr.mxu0 %v1009
    %1756 = vmatpush1.msra.mxu0 %v1008
    %1757 = vmatprep.subr.mxu0 %v1017
    %1758 = vmatpush1.msra.mxu0 %v1016
    %1759 = vmatprep.subr.mxu0 %v1025
    %1760 = vmatpush1.msra.mxu0 %v1024
    %1761 = vmatprep.subr.mxu0 %v1033
    %1762 = vmatpush1.msra.mxu0 %v1032
    %1763 = vmatprep.subr.mxu0 %v1041
    %1764 = vmatpush1.msra.mxu0 %v1040
    %1765 = vmatprep.subr.mxu0 %v1049
    %1766 = vmatpush1.msra.mxu0 %v1048
    %1767 = vmatprep.subr.mxu0 %v1057
    %1768 = vmatpush1.msra.mxu0 %v1056
    %1769 = vmatprep.subr.mxu0 %v1065
    %1770 = vmatpush1.msra.mxu0 %v1064
    %1771 = vmatprep.subr.mxu0 %v1073
    %1772 = vmatpush1.msra.mxu0 %v1072
    %1773 = vmatprep.subr.mxu0 %v1081
    %1774 = vmatpush1.msra.mxu0 %v1080
    %1775 = vmatprep.subr.mxu0 %v1089
    %1776 = vmatpush1.msra.mxu0 %v1088
    %1777 = vmatprep.subr.mxu0 %v1097
    %1778 = vmatpush1.msra.mxu0 %v1096
    %1779 = vmatprep.subr.mxu0 %v1105
    %1780 = vmatpush1.msra.mxu0 %v1104
    %1781 = vmatprep.subr.mxu0 %v1113
    %1782 = vmatpush1.msra.mxu0 %v1112
    %1783 = vmatprep.subr.mxu0 %v1121
    %1784 = vmatpush1.msra.mxu0 %v1120
    %1785 = vmatprep.subr.mxu0 %v1129
    %1786 = vmatpush1.msra.mxu0 %v1128
    %1787 = vmatprep.subr.mxu0 %v1137
    %1788 = vmatpush1.msra.mxu0 %v1136
    %1789 = vmatprep.subr.mxu0 %v1145
    %1790 = vmatpush1.msra.mxu0 %v1144
    %1791 = vmatprep.subr.mxu0 %v1153
    %1792 = vmatpush1.msra.mxu0 %v1152
    %1793 = vmatprep.subr.mxu0 %v1161
    %1794 = vmatpush1.msra.mxu0 %v1160
    %1795 = vmatprep.subr.mxu0 %v1169
    %1796 = vmatpush1.msra.mxu0 %v1168
    %1797 = vmatprep.subr.mxu0 %v1177
    %1798 = vmatpush1.msra.mxu0 %v1176
    %1799 = vmatprep.subr.mxu0 %v1185
    %1800 = vmatpush1.msra.mxu0 %v1184
    %1801 = vmatprep.subr.mxu0 %v1193
    %1802 = vmatpush1.msra.mxu0 %v1192
    %1803 = vmatprep.subr.mxu0 %v1201
    %1804 = vmatpush1.msra.mxu0 %v1200
    %1805 = vmatprep.mubr.f32.mxu0 %v689
    %1806 = vmatmul.mubr.f32.gmra.mrb[0].mxu0 %v688
    %v1807 = vpop.f32.mrb[0].mxu0
    %v1808 = vadd.f32 %v1737, %v1807
    %v1809 = vpop.f32.mrb[0].mxu0
    %v1810 = vadd.f32 %v1739, %v1809
    %1811 = vdwg.mxu0
    %vm1812 = vcmp.gt.f32.partialorder %v1382, 0.0
    %vm1813 = vcmp.gt.f32.partialorder %v1384, 0.0
    %vm1814 = vcmp.gt.f32.partialorder %v1524, 0.0
    %vm1815 = vcmp.gt.f32.partialorder %v1526, 0.0
    %vm1816 = vcmp.gt.f32.partialorder %v1666, 0.0
    %vm1817 = vcmp.gt.f32.partialorder %v1668, 0.0
    %vm1818 = vcmp.gt.f32.partialorder %v1808, 0.0
    %vm1819 = vcmp.gt.f32.partialorder %v1810, 0.0
    %v1820 = vmul.f32 %v1382, 0.2
    %v1821 = vmul.f32 %v1384, 0.2
    %v1822 = vmul.f32 %v1524, 0.2
    %v1823 = vmul.f32 %v1526, 0.2
    %v1824 = vmul.f32 %v1666, 0.2
    %v1825 = vmul.f32 %v1668, 0.2
    %v1826 = vmul.f32 %v1808, 0.2
    %v1827 = vmul.f32 %v1810, 0.2
    %v1828 = vsel %vm1812, %v1382, %v1820
    %v1829 = vsel %vm1813, %v1384, %v1821
    %v1830 = vsel %vm1814, %v1524, %v1822
    %v1831 = vsel %vm1815, %v1526, %v1823
    %v1832 = vsel %vm1816, %v1666, %v1824
    %v1833 = vsel %vm1817, %v1668, %v1825
    %v1834 = vsel %vm1818, %v1808, %v1826
    %v1835 = vsel %vm1819, %v1810, %v1827
    %v1836 = vld [vmem:[#allocation17] sm:$0xff]
    %v1837 = vld [vmem:[#allocation17 + $0x8] sm:$0xff]
    %v1838 = vld [vmem:[#allocation17 + $0x10] sm:$0xff]
    %v1839 = vld [vmem:[#allocation17 + $0x18] sm:$0xff]
    %v1840 = vld [vmem:[#allocation17 + $0x20] sm:$0xff]
    %v1841 = vld [vmem:[#allocation17 + $0x28] sm:$0xff]
    %v1842 = vld [vmem:[#allocation17 + $0x30] sm:$0xff]
    %v1843 = vld [vmem:[#allocation17 + $0x38] sm:$0xff]
    %v1844 = vld [vmem:[#allocation17 + $0x40] sm:$0xff]
    %v1845 = vld [vmem:[#allocation17 + $0x48] sm:$0xff]
    %v1846 = vld [vmem:[#allocation17 + $0x50] sm:$0xff]
    %v1847 = vld [vmem:[#allocation17 + $0x58] sm:$0xff]
    %v1848 = vld [vmem:[#allocation17 + $0x60] sm:$0xff]
    %v1849 = vld [vmem:[#allocation17 + $0x68] sm:$0xff]
    %v1850 = vld [vmem:[#allocation17 + $0x70] sm:$0xff]
    %v1851 = vld [vmem:[#allocation17 + $0x78] sm:$0xff]
    %v1852 = vld [vmem:[#allocation17 + $0x80] sm:$0xff]
    %v1853 = vld [vmem:[#allocation17 + $0x88] sm:$0xff]
    %v1854 = vld [vmem:[#allocation17 + $0x90] sm:$0xff]
    %v1855 = vld [vmem:[#allocation17 + $0x98] sm:$0xff]
    %v1856 = vld [vmem:[#allocation17 + $0xa0] sm:$0xff]
    %v1857 = vld [vmem:[#allocation17 + $0xa8] sm:$0xff]
    %v1858 = vld [vmem:[#allocation17 + $0xb0] sm:$0xff]
    %v1859 = vld [vmem:[#allocation17 + $0xb8] sm:$0xff]
    %v1860 = vld [vmem:[#allocation17 + $0xc0] sm:$0xff]
    %v1861 = vld [vmem:[#allocation17 + $0xc8] sm:$0xff]
    %v1862 = vld [vmem:[#allocation17 + $0xd0] sm:$0xff]
    %v1863 = vld [vmem:[#allocation17 + $0xd8] sm:$0xff]
    %v1864 = vld [vmem:[#allocation17 + $0xe0] sm:$0xff]
    %v1865 = vld [vmem:[#allocation17 + $0xe8] sm:$0xff]
    %v1866 = vld [vmem:[#allocation17 + $0xf0] sm:$0xff]
    %v1867 = vld [vmem:[#allocation17 + $0xf8] sm:$0xff]
    %v1868 = vld [vmem:[#allocation17 + $0x100] sm:$0xff]
    %v1869 = vld [vmem:[#allocation17 + $0x108] sm:$0xff]
    %v1870 = vld [vmem:[#allocation17 + $0x110] sm:$0xff]
    %v1871 = vld [vmem:[#allocation17 + $0x118] sm:$0xff]
    %v1872 = vld [vmem:[#allocation17 + $0x120] sm:$0xff]
    %v1873 = vld [vmem:[#allocation17 + $0x128] sm:$0xff]
    %v1874 = vld [vmem:[#allocation17 + $0x130] sm:$0xff]
    %v1875 = vld [vmem:[#allocation17 + $0x138] sm:$0xff]
    %v1876 = vld [vmem:[#allocation17 + $0x140] sm:$0xff]
    %v1877 = vld [vmem:[#allocation17 + $0x148] sm:$0xff]
    %v1878 = vld [vmem:[#allocation17 + $0x150] sm:$0xff]
    %v1879 = vld [vmem:[#allocation17 + $0x158] sm:$0xff]
    %v1880 = vld [vmem:[#allocation17 + $0x160] sm:$0xff]
    %v1881 = vld [vmem:[#allocation17 + $0x168] sm:$0xff]
    %v1882 = vld [vmem:[#allocation17 + $0x170] sm:$0xff]
    %v1883 = vld [vmem:[#allocation17 + $0x178] sm:$0xff]
    %v1884 = vld [vmem:[#allocation17 + $0x180] sm:$0xff]
    %v1885 = vld [vmem:[#allocation17 + $0x188] sm:$0xff]
    %v1886 = vld [vmem:[#allocation17 + $0x190] sm:$0xff]
    %v1887 = vld [vmem:[#allocation17 + $0x198] sm:$0xff]
    %v1888 = vld [vmem:[#allocation17 + $0x1a0] sm:$0xff]
    %v1889 = vld [vmem:[#allocation17 + $0x1a8] sm:$0xff]
    %v1890 = vld [vmem:[#allocation17 + $0x1b0] sm:$0xff]
    %v1891 = vld [vmem:[#allocation17 + $0x1b8] sm:$0xff]
    %v1892 = vld [vmem:[#allocation17 + $0x1c0] sm:$0xff]
    %v1893 = vld [vmem:[#allocation17 + $0x1c8] sm:$0xff]
    %v1894 = vld [vmem:[#allocation17 + $0x1d0] sm:$0xff]
    %v1895 = vld [vmem:[#allocation17 + $0x1d8] sm:$0xff]
    %v1896 = vld [vmem:[#allocation17 + $0x1e0] sm:$0xff]
    %v1897 = vld [vmem:[#allocation17 + $0x1e8] sm:$0xff]
    %v1898 = vld [vmem:[#allocation17 + $0x1f0] sm:$0xff]
    %v1899 = vld [vmem:[#allocation17 + $0x1f8] sm:$0xff]
    %v1900 = vld [vmem:[#allocation17 + $0x200] sm:$0xff]
    %v1901 = vld [vmem:[#allocation17 + $0x208] sm:$0xff]
    %v1902 = vld [vmem:[#allocation17 + $0x210] sm:$0xff]
    %v1903 = vld [vmem:[#allocation17 + $0x218] sm:$0xff]
    %v1904 = vld [vmem:[#allocation17 + $0x220] sm:$0xff]
    %v1905 = vld [vmem:[#allocation17 + $0x228] sm:$0xff]
    %v1906 = vld [vmem:[#allocation17 + $0x230] sm:$0xff]
    %v1907 = vld [vmem:[#allocation17 + $0x238] sm:$0xff]
    %v1908 = vld [vmem:[#allocation17 + $0x240] sm:$0xff]
    %v1909 = vld [vmem:[#allocation17 + $0x248] sm:$0xff]
    %v1910 = vld [vmem:[#allocation17 + $0x250] sm:$0xff]
    %v1911 = vld [vmem:[#allocation17 + $0x258] sm:$0xff]
    %v1912 = vld [vmem:[#allocation17 + $0x260] sm:$0xff]
    %v1913 = vld [vmem:[#allocation17 + $0x268] sm:$0xff]
    %v1914 = vld [vmem:[#allocation17 + $0x270] sm:$0xff]
    %v1915 = vld [vmem:[#allocation17 + $0x278] sm:$0xff]
    %v1916 = vld [vmem:[#allocation17 + $0x280] sm:$0xff]
    %v1917 = vld [vmem:[#allocation17 + $0x288] sm:$0xff]
    %v1918 = vld [vmem:[#allocation17 + $0x290] sm:$0xff]
    %v1919 = vld [vmem:[#allocation17 + $0x298] sm:$0xff]
    %v1920 = vld [vmem:[#allocation17 + $0x2a0] sm:$0xff]
    %v1921 = vld [vmem:[#allocation17 + $0x2a8] sm:$0xff]
    %v1922 = vld [vmem:[#allocation17 + $0x2b0] sm:$0xff]
    %v1923 = vld [vmem:[#allocation17 + $0x2b8] sm:$0xff]
    %v1924 = vld [vmem:[#allocation17 + $0x2c0] sm:$0xff]
    %v1925 = vld [vmem:[#allocation17 + $0x2c8] sm:$0xff]
    %v1926 = vld [vmem:[#allocation17 + $0x2d0] sm:$0xff]
    %v1927 = vld [vmem:[#allocation17 + $0x2d8] sm:$0xff]
    %v1928 = vld [vmem:[#allocation17 + $0x2e0] sm:$0xff]
    %v1929 = vld [vmem:[#allocation17 + $0x2e8] sm:$0xff]
    %v1930 = vld [vmem:[#allocation17 + $0x2f0] sm:$0xff]
    %v1931 = vld [vmem:[#allocation17 + $0x2f8] sm:$0xff]
    %v1932 = vld [vmem:[#allocation17 + $0x300] sm:$0xff]
    %v1933 = vld [vmem:[#allocation17 + $0x308] sm:$0xff]
    %v1934 = vld [vmem:[#allocation17 + $0x310] sm:$0xff]
    %v1935 = vld [vmem:[#allocation17 + $0x318] sm:$0xff]
    %v1936 = vld [vmem:[#allocation17 + $0x320] sm:$0xff]
    %v1937 = vld [vmem:[#allocation17 + $0x328] sm:$0xff]
    %v1938 = vld [vmem:[#allocation17 + $0x330] sm:$0xff]
    %v1939 = vld [vmem:[#allocation17 + $0x338] sm:$0xff]
    %v1940 = vld [vmem:[#allocation17 + $0x340] sm:$0xff]
    %v1941 = vld [vmem:[#allocation17 + $0x348] sm:$0xff]
    %v1942 = vld [vmem:[#allocation17 + $0x350] sm:$0xff]
    %v1943 = vld [vmem:[#allocation17 + $0x358] sm:$0xff]
    %v1944 = vld [vmem:[#allocation17 + $0x360] sm:$0xff]
    %v1945 = vld [vmem:[#allocation17 + $0x368] sm:$0xff]
    %v1946 = vld [vmem:[#allocation17 + $0x370] sm:$0xff]
    %v1947 = vld [vmem:[#allocation17 + $0x378] sm:$0xff]
    %v1948 = vld [vmem:[#allocation17 + $0x380] sm:$0xff]
    %v1949 = vld [vmem:[#allocation17 + $0x388] sm:$0xff]
    %v1950 = vld [vmem:[#allocation17 + $0x390] sm:$0xff]
    %v1951 = vld [vmem:[#allocation17 + $0x398] sm:$0xff]
    %v1952 = vld [vmem:[#allocation17 + $0x3a0] sm:$0xff]
    %v1953 = vld [vmem:[#allocation17 + $0x3a8] sm:$0xff]
    %v1954 = vld [vmem:[#allocation17 + $0x3b0] sm:$0xff]
    %v1955 = vld [vmem:[#allocation17 + $0x3b8] sm:$0xff]
    %v1956 = vld [vmem:[#allocation17 + $0x3c0] sm:$0xff]
    %v1957 = vld [vmem:[#allocation17 + $0x3c8] sm:$0xff]
    %v1958 = vld [vmem:[#allocation17 + $0x3d0] sm:$0xff]
    %v1959 = vld [vmem:[#allocation17 + $0x3d8] sm:$0xff]
    %v1960 = vld [vmem:[#allocation17 + $0x3e0] sm:$0xff]
    %v1961 = vld [vmem:[#allocation17 + $0x3e8] sm:$0xff]
    %v1962 = vld [vmem:[#allocation17 + $0x3f0] sm:$0xff]
    %v1963 = vld [vmem:[#allocation17 + $0x3f8] sm:$0xff]
    %v1964 = vld [vmem:[#allocation19] sm:$0x1]
    %v1966 = vlaneseq
    %v1967 = vshrl.u32 %v1966, 7
    %v1968 = vsub.s32 0, %v1967
    %v1969 = vrot.slane %v1964, %v1968
    %1971 = vmatprep.subr.mxu0 0.0
    %1972 = vmatpush1.msra.mxu0 %v1836
    %1973 = vmatprep.subr.mxu0 0.0
    %1974 = vmatpush1.msra.mxu0 %v1837
    %1975 = vmatprep.subr.mxu0 0.0
    %1976 = vmatpush1.msra.mxu0 %v1838
    %1977 = vmatprep.subr.mxu0 0.0
    %1978 = vmatpush1.msra.mxu0 %v1839
    %1979 = vmatprep.subr.mxu0 0.0
    %1980 = vmatpush1.msra.mxu0 %v1840
    %1981 = vmatprep.subr.mxu0 0.0
    %1982 = vmatpush1.msra.mxu0 %v1841
    %1983 = vmatprep.subr.mxu0 0.0
    %1984 = vmatpush1.msra.mxu0 %v1842
    %1985 = vmatprep.subr.mxu0 0.0
    %1986 = vmatpush1.msra.mxu0 %v1843
    %1987 = vmatprep.subr.mxu0 0.0
    %1988 = vmatpush1.msra.mxu0 %v1844
    %1989 = vmatprep.subr.mxu0 0.0
    %1990 = vmatpush1.msra.mxu0 %v1845
    %1991 = vmatprep.subr.mxu0 0.0
    %1992 = vmatpush1.msra.mxu0 %v1846
    %1993 = vmatprep.subr.mxu0 0.0
    %1994 = vmatpush1.msra.mxu0 %v1847
    %1995 = vmatprep.subr.mxu0 0.0
    %1996 = vmatpush1.msra.mxu0 %v1848
    %1997 = vmatprep.subr.mxu0 0.0
    %1998 = vmatpush1.msra.mxu0 %v1849
    %1999 = vmatprep.subr.mxu0 0.0
    %2000 = vmatpush1.msra.mxu0 %v1850
    %2001 = vmatprep.subr.mxu0 0.0
    %2002 = vmatpush1.msra.mxu0 %v1851
    %2003 = vmatprep.subr.mxu0 0.0
    %2004 = vmatpush1.msra.mxu0 %v1852
    %2005 = vmatprep.subr.mxu0 0.0
    %2006 = vmatpush1.msra.mxu0 %v1853
    %2007 = vmatprep.subr.mxu0 0.0
    %2008 = vmatpush1.msra.mxu0 %v1854
    %2009 = vmatprep.subr.mxu0 0.0
    %2010 = vmatpush1.msra.mxu0 %v1855
    %2011 = vmatprep.subr.mxu0 0.0
    %2012 = vmatpush1.msra.mxu0 %v1856
    %2013 = vmatprep.subr.mxu0 0.0
    %2014 = vmatpush1.msra.mxu0 %v1857
    %2015 = vmatprep.subr.mxu0 0.0
    %2016 = vmatpush1.msra.mxu0 %v1858
    %2017 = vmatprep.subr.mxu0 0.0
    %2018 = vmatpush1.msra.mxu0 %v1859
    %2019 = vmatprep.subr.mxu0 0.0
    %2020 = vmatpush1.msra.mxu0 %v1860
    %2021 = vmatprep.subr.mxu0 0.0
    %2022 = vmatpush1.msra.mxu0 %v1861
    %2023 = vmatprep.subr.mxu0 0.0
    %2024 = vmatpush1.msra.mxu0 %v1862
    %2025 = vmatprep.subr.mxu0 0.0
    %2026 = vmatpush1.msra.mxu0 %v1863
    %2027 = vmatprep.subr.mxu0 0.0
    %2028 = vmatpush1.msra.mxu0 %v1864
    %2029 = vmatprep.subr.mxu0 0.0
    %2030 = vmatpush1.msra.mxu0 %v1865
    %2031 = vmatprep.subr.mxu0 0.0
    %2032 = vmatpush1.msra.mxu0 %v1866
    %2033 = vmatprep.subr.mxu0 0.0
    %2034 = vmatpush1.msra.mxu0 %v1867
    %2035 = vmatprep.mubr.f32.mxu0 %v1829
    %2036 = vmatmul.mubr.f32.gmra.mrb[0].mxu0 %v1828
    %v2037 = vpop.f32.mrb[0].mxu0
    %v2038 = vadd.f32 %v1969, %v2037
    %v2039 = vpop.f32.mrb[0].mxu0
    %2040 = vdwg.mxu0
    %2041 = vmatprep.subr.mxu0 0.0
    %2042 = vmatpush1.msra.mxu0 %v1868
    %2043 = vmatprep.subr.mxu0 0.0
    %2044 = vmatpush1.msra.mxu0 %v1869
    %2045 = vmatprep.subr.mxu0 0.0
    %2046 = vmatpush1.msra.mxu0 %v1870
    %2047 = vmatprep.subr.mxu0 0.0
    %2048 = vmatpush1.msra.mxu0 %v1871
    %2049 = vmatprep.subr.mxu0 0.0
    %2050 = vmatpush1.msra.mxu0 %v1872
    %2051 = vmatprep.subr.mxu0 0.0
    %2052 = vmatpush1.msra.mxu0 %v1873
    %2053 = vmatprep.subr.mxu0 0.0
    %2054 = vmatpush1.msra.mxu0 %v1874
    %2055 = vmatprep.subr.mxu0 0.0
    %2056 = vmatpush1.msra.mxu0 %v1875
    %2057 = vmatprep.subr.mxu0 0.0
    %2058 = vmatpush1.msra.mxu0 %v1876
    %2059 = vmatprep.subr.mxu0 0.0
    %2060 = vmatpush1.msra.mxu0 %v1877
    %2061 = vmatprep.subr.mxu0 0.0
    %2062 = vmatpush1.msra.mxu0 %v1878
    %2063 = vmatprep.subr.mxu0 0.0
    %2064 = vmatpush1.msra.mxu0 %v1879
    %2065 = vmatprep.subr.mxu0 0.0
    %2066 = vmatpush1.msra.mxu0 %v1880
    %2067 = vmatprep.subr.mxu0 0.0
    %2068 = vmatpush1.msra.mxu0 %v1881
    %2069 = vmatprep.subr.mxu0 0.0
    %2070 = vmatpush1.msra.mxu0 %v1882
    %2071 = vmatprep.subr.mxu0 0.0
    %2072 = vmatpush1.msra.mxu0 %v1883
    %2073 = vmatprep.subr.mxu0 0.0
    %2074 = vmatpush1.msra.mxu0 %v1884
    %2075 = vmatprep.subr.mxu0 0.0
    %2076 = vmatpush1.msra.mxu0 %v1885
    %2077 = vmatprep.subr.mxu0 0.0
    %2078 = vmatpush1.msra.mxu0 %v1886
    %2079 = vmatprep.subr.mxu0 0.0
    %2080 = vmatpush1.msra.mxu0 %v1887
    %2081 = vmatprep.subr.mxu0 0.0
    %2082 = vmatpush1.msra.mxu0 %v1888
    %2083 = vmatprep.subr.mxu0 0.0
    %2084 = vmatpush1.msra.mxu0 %v1889
    %2085 = vmatprep.subr.mxu0 0.0
    %2086 = vmatpush1.msra.mxu0 %v1890
    %2087 = vmatprep.subr.mxu0 0.0
    %2088 = vmatpush1.msra.mxu0 %v1891
    %2089 = vmatprep.subr.mxu0 0.0
    %2090 = vmatpush1.msra.mxu0 %v1892
    %2091 = vmatprep.subr.mxu0 0.0
    %2092 = vmatpush1.msra.mxu0 %v1893
    %2093 = vmatprep.subr.mxu0 0.0
    %2094 = vmatpush1.msra.mxu0 %v1894
    %2095 = vmatprep.subr.mxu0 0.0
    %2096 = vmatpush1.msra.mxu0 %v1895
    %2097 = vmatprep.subr.mxu0 0.0
    %2098 = vmatpush1.msra.mxu0 %v1896
    %2099 = vmatprep.subr.mxu0 0.0
    %2100 = vmatpush1.msra.mxu0 %v1897
    %2101 = vmatprep.subr.mxu0 0.0
    %2102 = vmatpush1.msra.mxu0 %v1898
    %2103 = vmatprep.subr.mxu0 0.0
    %2104 = vmatpush1.msra.mxu0 %v1899
    %2105 = vmatprep.mubr.f32.mxu0 %v1831
    %2106 = vmatmul.mubr.f32.gmra.mrb[0].mxu0 %v1830
    %v2107 = vpop.f32.mrb[0].mxu0
    %v2108 = vadd.f32 %v2038, %v2107
    %v2109 = vpop.f32.mrb[0].mxu0
    %2110 = vdwg.mxu0
    %2111 = vmatprep.subr.mxu0 0.0
    %2112 = vmatpush1.msra.mxu0 %v1900
    %2113 = vmatprep.subr.mxu0 0.0
    %2114 = vmatpush1.msra.mxu0 %v1901
    %2115 = vmatprep.subr.mxu0 0.0
    %2116 = vmatpush1.msra.mxu0 %v1902
    %2117 = vmatprep.subr.mxu0 0.0
    %2118 = vmatpush1.msra.mxu0 %v1903
    %2119 = vmatprep.subr.mxu0 0.0
    %2120 = vmatpush1.msra.mxu0 %v1904
    %2121 = vmatprep.subr.mxu0 0.0
    %2122 = vmatpush1.msra.mxu0 %v1905
    %2123 = vmatprep.subr.mxu0 0.0
    %2124 = vmatpush1.msra.mxu0 %v1906
    %2125 = vmatprep.subr.mxu0 0.0
    %2126 = vmatpush1.msra.mxu0 %v1907
    %2127 = vmatprep.subr.mxu0 0.0
    %2128 = vmatpush1.msra.mxu0 %v1908
    %2129 = vmatprep.subr.mxu0 0.0
    %2130 = vmatpush1.msra.mxu0 %v1909
    %2131 = vmatprep.subr.mxu0 0.0
    %2132 = vmatpush1.msra.mxu0 %v1910
    %2133 = vmatprep.subr.mxu0 0.0
    %2134 = vmatpush1.msra.mxu0 %v1911
    %2135 = vmatprep.subr.mxu0 0.0
    %2136 = vmatpush1.msra.mxu0 %v1912
    %2137 = vmatprep.subr.mxu0 0.0
    %2138 = vmatpush1.msra.mxu0 %v1913
    %2139 = vmatprep.subr.mxu0 0.0
    %2140 = vmatpush1.msra.mxu0 %v1914
    %2141 = vmatprep.subr.mxu0 0.0
    %2142 = vmatpush1.msra.mxu0 %v1915
    %2143 = vmatprep.subr.mxu0 0.0
    %2144 = vmatpush1.msra.mxu0 %v1916
    %2145 = vmatprep.subr.mxu0 0.0
    %2146 = vmatpush1.msra.mxu0 %v1917
    %2147 = vmatprep.subr.mxu0 0.0
    %2148 = vmatpush1.msra.mxu0 %v1918
    %2149 = vmatprep.subr.mxu0 0.0
    %2150 = vmatpush1.msra.mxu0 %v1919
    %2151 = vmatprep.subr.mxu0 0.0
    %2152 = vmatpush1.msra.mxu0 %v1920
    %2153 = vmatprep.subr.mxu0 0.0
    %2154 = vmatpush1.msra.mxu0 %v1921
    %2155 = vmatprep.subr.mxu0 0.0
    %2156 = vmatpush1.msra.mxu0 %v1922
    %2157 = vmatprep.subr.mxu0 0.0
    %2158 = vmatpush1.msra.mxu0 %v1923
    %2159 = vmatprep.subr.mxu0 0.0
    %2160 = vmatpush1.msra.mxu0 %v1924
    %2161 = vmatprep.subr.mxu0 0.0
    %2162 = vmatpush1.msra.mxu0 %v1925
    %2163 = vmatprep.subr.mxu0 0.0
    %2164 = vmatpush1.msra.mxu0 %v1926
    %2165 = vmatprep.subr.mxu0 0.0
    %2166 = vmatpush1.msra.mxu0 %v1927
    %2167 = vmatprep.subr.mxu0 0.0
    %2168 = vmatpush1.msra.mxu0 %v1928
    %2169 = vmatprep.subr.mxu0 0.0
    %2170 = vmatpush1.msra.mxu0 %v1929
    %2171 = vmatprep.subr.mxu0 0.0
    %2172 = vmatpush1.msra.mxu0 %v1930
    %2173 = vmatprep.subr.mxu0 0.0
    %2174 = vmatpush1.msra.mxu0 %v1931
    %2175 = vmatprep.mubr.f32.mxu0 %v1833
    %2176 = vmatmul.mubr.f32.gmra.mrb[0].mxu0 %v1832
    %v2177 = vpop.f32.mrb[0].mxu0
    %v2178 = vadd.f32 %v2108, %v2177
    %v2179 = vpop.f32.mrb[0].mxu0
    %2180 = vdwg.mxu0
    %2181 = vmatprep.subr.mxu0 0.0
    %2182 = vmatpush1.msra.mxu0 %v1932
    %2183 = vmatprep.subr.mxu0 0.0
    %2184 = vmatpush1.msra.mxu0 %v1933
    %2185 = vmatprep.subr.mxu0 0.0
    %2186 = vmatpush1.msra.mxu0 %v1934
    %2187 = vmatprep.subr.mxu0 0.0
    %2188 = vmatpush1.msra.mxu0 %v1935
    %2189 = vmatprep.subr.mxu0 0.0
    %2190 = vmatpush1.msra.mxu0 %v1936
    %2191 = vmatprep.subr.mxu0 0.0
    %2192 = vmatpush1.msra.mxu0 %v1937
    %2193 = vmatprep.subr.mxu0 0.0
    %2194 = vmatpush1.msra.mxu0 %v1938
    %2195 = vmatprep.subr.mxu0 0.0
    %2196 = vmatpush1.msra.mxu0 %v1939
    %2197 = vmatprep.subr.mxu0 0.0
    %2198 = vmatpush1.msra.mxu0 %v1940
    %2199 = vmatprep.subr.mxu0 0.0
    %2200 = vmatpush1.msra.mxu0 %v1941
    %2201 = vmatprep.subr.mxu0 0.0
    %2202 = vmatpush1.msra.mxu0 %v1942
    %2203 = vmatprep.subr.mxu0 0.0
    %2204 = vmatpush1.msra.mxu0 %v1943
    %2205 = vmatprep.subr.mxu0 0.0
    %2206 = vmatpush1.msra.mxu0 %v1944
    %2207 = vmatprep.subr.mxu0 0.0
    %2208 = vmatpush1.msra.mxu0 %v1945
    %2209 = vmatprep.subr.mxu0 0.0
    %2210 = vmatpush1.msra.mxu0 %v1946
    %2211 = vmatprep.subr.mxu0 0.0
    %2212 = vmatpush1.msra.mxu0 %v1947
    %2213 = vmatprep.subr.mxu0 0.0
    %2214 = vmatpush1.msra.mxu0 %v1948
    %2215 = vmatprep.subr.mxu0 0.0
    %2216 = vmatpush1.msra.mxu0 %v1949
    %2217 = vmatprep.subr.mxu0 0.0
    %2218 = vmatpush1.msra.mxu0 %v1950
    %2219 = vmatprep.subr.mxu0 0.0
    %2220 = vmatpush1.msra.mxu0 %v1951
    %2221 = vmatprep.subr.mxu0 0.0
    %2222 = vmatpush1.msra.mxu0 %v1952
    %2223 = vmatprep.subr.mxu0 0.0
    %2224 = vmatpush1.msra.mxu0 %v1953
    %2225 = vmatprep.subr.mxu0 0.0
    %2226 = vmatpush1.msra.mxu0 %v1954
    %2227 = vmatprep.subr.mxu0 0.0
    %2228 = vmatpush1.msra.mxu0 %v1955
    %2229 = vmatprep.subr.mxu0 0.0
    %2230 = vmatpush1.msra.mxu0 %v1956
    %2231 = vmatprep.subr.mxu0 0.0
    %2232 = vmatpush1.msra.mxu0 %v1957
    %2233 = vmatprep.subr.mxu0 0.0
    %2234 = vmatpush1.msra.mxu0 %v1958
    %2235 = vmatprep.subr.mxu0 0.0
    %2236 = vmatpush1.msra.mxu0 %v1959
    %2237 = vmatprep.subr.mxu0 0.0
    %2238 = vmatpush1.msra.mxu0 %v1960
    %2239 = vmatprep.subr.mxu0 0.0
    %2240 = vmatpush1.msra.mxu0 %v1961
    %2241 = vmatprep.subr.mxu0 0.0
    %2242 = vmatpush1.msra.mxu0 %v1962
    %2243 = vmatprep.subr.mxu0 0.0
    %2244 = vmatpush1.msra.mxu0 %v1963
    %2245 = vmatprep.mubr.f32.mxu0 %v1835
    %2246 = vmatmul.mubr.f32.gmra.mrb[0].mxu0 %v1834
    %v2247 = vpop.f32.mrb[0].mxu0
    %v2248 = vadd.f32 %v2178, %v2247
    %v2249 = vpop.f32.mrb[0].mxu0
    %2250 = vdwg.mxu0
    %v2251 = vtanh.pop %v2248
    %2252 = vst [vmem:[#allocation20] sm:$0x3] %v2251
    // Predicated region
    $region90: #{tpu_custom_call.1} parent=1 // pred_check
      _
    $region91: #{tpu_custom_call.1} parent=1 // pred_check_branch
      %2254 = sbr.rel (0) target = $region93
    $region92: #{tpu_custom_call.1} parent=1 // pred_region
      %s2256 = ssub.s32 32, 32
      %2257 = vsyncadd [#allocation4], %s2256
      %s2259 = sshll.u32 [#allocation20], 4
      %s2260 = int_to_ptr.vmem [resolvable:$true] %s2259
      %2262 = dma.vmem_to_hbm [thread:$0]  %s2260, 32, %s11, [#allocation4]
    $region93: #{tpu_custom_call.1} parent=1 // pred_fallthru
      _
    // Predicated region
    $region94: #{tpu_custom_call.1} parent=1 // pred_check
      _
    $region95: #{tpu_custom_call.1} parent=1 // pred_check_branch
      %2264 = sbr.rel (0) target = $region97
    $region96: #{tpu_custom_call.1} parent=1 // pred_region
      %2265 = dma.done [#allocation4], 32
    $region97: #{tpu_custom_call.1} parent=1 // pred_fallthru
      _
    %2266 = vsyncpa [#allocation3], 1
    %2267 = vsyncpa [#allocation6], 1
    %2268 = vsyncpa [#allocation9], 1
    %2269 = vsyncpa [#allocation12], 1
    %2270 = vsyncpa [#allocation15], 1
    %2271 = vsyncpa [#allocation18], 1
    %2272 = vsyncpa [#allocation4], 1

</llo_original>
